<compile_context>
chip_gen: v6e
topology: v6e:2x2x1
jax: 0.10.0
libtpu: 0.0.40
codegen_flags: <defaults>
</compile_context>

<pallas_src>
import math

import jax
import jax.numpy as jnp
from jax import lax
from jax.experimental import pallas as pl
from jax.experimental.pallas import tpu as pltpu


def basic_block_kernel(xp_ref, scale_ref, bias_ref, w_ref, o_ref):
    # xp_ref:   (1, H+2, W+2, Cin)  zero-padded raw input (NHWC), f32
    # scale_ref:(1, Cin)            folded BN scale = gamma / sqrt(var + eps)
    # bias_ref: (1, Cin)            folded BN bias  = beta - mean * scale
    # w_ref:    (9*Cin, Cout_pad)   conv weight, (kh, kw, ci) flattened, bf16
    # o_ref:    (1, H*W, Cout_pad)  lane-dense output (Cout padded to 128), f32
    Hp, Wp, Cin = xp_ref.shape[1], xp_ref.shape[2], xp_ref.shape[3]
    H, W = Hp - 2, Wp - 2
    KC = w_ref.shape[0]  # 9 * Cin

    # Folded BatchNorm + ReLU in f32 on the VPU.
    xp = xp_ref[0]
    a = jnp.maximum(xp * scale_ref[0] + bias_ref[0], 0.0)

    # The halo rows/cols came in as raw zeros; BN+ReLU would turn them into
    # relu(bias), so mask them back to exactly zero (the conv's zero padding).
    r = lax.broadcasted_iota(jnp.int32, (Hp, Wp, Cin), 0)
    c = lax.broadcasted_iota(jnp.int32, (Hp, Wp, Cin), 1)
    inside = (r >= 1) & (r <= H) & (c >= 1) & (c <= W)
    a = jnp.where(inside, a, 0.0)

    # im2col: (H, W, 9*Cin) patch tensor built once in registers, then a single
    # K=9*Cin matmul on the MXU (bf16 operands, f32 accumulation).
    patches = jnp.concatenate(
        [a[kh:kh + H, kw:kw + W, :] for kh in range(3) for kw in range(3)],
        axis=-1)
    patches = patches.reshape(H * W, KC).astype(jnp.bfloat16)

    o_ref[0] = jnp.dot(
        patches, w_ref[...],
        preferred_element_type=jnp.float32).astype(o_ref.dtype)


def basic_block_forward(x_nchw, gamma, beta, run_mean, run_var, conv_w,
                        eps=1e-5, drop_rate=0.0):
    """Matches BasicBlock.forward (eval mode: running-stat BN, dropout = id)."""
    # TODO(synk): training-mode dropout (dropRate > 0, training=True) and
    # training-mode BN (batch stats + running-stat update) are not implemented.
    N, Cin, H, W = x_nchw.shape
    Cout = conv_w.shape[0]
    Cpad = ((Cout + 127) // 128) * 128     # lane-dense output channels
    KC = 9 * Cin

    # Fold BN (inference / running-stats semantics) into scale/bias.
    scale = gamma / jnp.sqrt(run_var + eps)
    bias = beta - run_mean * scale

    # NCHW -> NHWC and zero-pad the spatial dims once in HBM (aligned reads
    # in the kernel; no in-kernel padded scratch / unaligned stores).
    x_nhwc = jnp.transpose(x_nchw, (0, 2, 3, 1))
    x_pad = jnp.pad(x_nhwc, ((0, 0), (1, 1), (1, 1), (0, 0)))

    # OIHW -> (kh, kw, ci, co) -> (9*Cin, Cout), zero-pad Cout to 128, bf16.
    w_mat = jnp.transpose(conv_w, (2, 3, 1, 0)).reshape(KC, Cout)
    w_mat = jnp.pad(w_mat, ((0, 0), (0, Cpad - Cout))).astype(jnp.bfloat16)

    out_flat = pl.pallas_call(
        basic_block_kernel,
        out_shape=jax.ShapeDtypeStruct((N, H * W, Cpad), x_nchw.dtype),
        grid_spec=pltpu.PrefetchScalarGridSpec(
            num_scalar_prefetch=0,
            grid=(N,),
            in_specs=[
                pl.BlockSpec((1, H + 2, W + 2, Cin), lambda n: (n, 0, 0, 0)),
                pl.BlockSpec((1, Cin), lambda n: (0, 0)),
                pl.BlockSpec((1, Cin), lambda n: (0, 0)),
                pl.BlockSpec((KC, Cpad), lambda n: (0, 0)),
            ],
            out_specs=pl.BlockSpec((1, H * W, Cpad), lambda n: (n, 0, 0)),
        ),
        compiler_params=pltpu.CompilerParams(
            dimension_semantics=("parallel",)),
    )(x_pad, scale.reshape(1, Cin), bias.reshape(1, Cin), w_mat)

    # Slice the real channels back out, return to NCHW, concat with the input.
    out_nchw = jnp.transpose(
        out_flat.reshape(N, H, W, Cpad)[..., :Cout], (0, 3, 1, 2))
    return jnp.concatenate([x_nchw, out_nchw], axis=1)


def reference_forward_mirror(x, gamma, beta, run_mean, run_var, w, eps=1e-5):
    """Pure-JAX reference mirroring the kernel's numerics (bf16 MXU operands)."""
    scale = gamma / jnp.sqrt(run_var + eps)
    bias = beta - run_mean * scale
    a = jnp.maximum(
        x * scale[None, :, None, None] + bias[None, :, None, None], 0.0)
    out = lax.conv_general_dilated(
        a.astype(jnp.bfloat16), w.astype(jnp.bfloat16),
        window_strides=(1, 1), padding=((1, 1), (1, 1)),
        dimension_numbers=("NCHW", "OIHW", "NCHW"),
        preferred_element_type=jnp.float32)
    return jnp.concatenate([x, out.astype(x.dtype)], axis=1)


def reference_forward_f32(x, gamma, beta, run_mean, run_var, w, eps=1e-5):
    """Full-f32 reference of the PyTorch forward (eval-mode BN)."""
    xn = (x - run_mean[None, :, None, None]) / jnp.sqrt(
        run_var[None, :, None, None] + eps)
    xn = xn * gamma[None, :, None, None] + beta[None, :, None, None]
    a = jnp.maximum(xn, 0.0)
    out = lax.conv_general_dilated(
        a, w, window_strides=(1, 1), padding=((1, 1), (1, 1)),
        dimension_numbers=("NCHW", "OIHW", "NCHW"),
        precision=lax.Precision.HIGHEST)
    return jnp.concatenate([x, out], axis=1)


if __name__ == "__main__":
    key = jax.random.PRNGKey(0)
    N, Cin, H, W = 2, 4, 16, 16
    Cout = 8  # out_planes

    k1, k2, k3, k4, k5, k6 = jax.random.split(key, 6)
    x = jax.random.normal(k1, (N, Cin, H, W), jnp.float32)
    # Deterministic, non-trivial BatchNorm2d parameters / running stats.
    gamma = 1.0 + 0.1 * jax.random.normal(k2, (Cin,), jnp.float32)
    beta = 0.1 * jax.random.normal(k3, (Cin,), jnp.float32)
    run_mean = 0.1 * jax.random.normal(k4, (Cin,), jnp.float32)
    run_var = jax.random.uniform(k5, (Cin,), jnp.float32, minval=0.5, maxval=1.5)
    # Conv2d(in_planes, out_planes, 3, 1, 1, bias=False) weight, OIHW.
    conv_w = jax.random.normal(k6, (Cout, Cin, 3, 3), jnp.float32) / math.sqrt(Cin * 9)

    out = basic_block_forward(x, gamma, beta, run_mean, run_var, conv_w)
    out = jax.block_until_ready(out)
    assert out.shape == (N, Cin + Cout, H, W), out.shape

    # Tight check vs. a reference that mirrors the kernel's bf16-MXU numerics.
    ref_m = reference_forward_mirror(x, gamma, beta, run_mean, run_var, conv_w)
    err_m = float(jnp.max(jnp.abs(out - ref_m)))
    assert jnp.allclose(out, ref_m, atol=5e-3, rtol=5e-3), err_m

    # Loose check vs. the full-f32 PyTorch-semantics reference (bf16 MXU tol).
    ref_f = reference_forward_f32(x, gamma, beta, run_mean, run_var, conv_w)
    err_f = float(jnp.max(jnp.abs(out - ref_f)))
    assert jnp.allclose(out, ref_f, atol=5e-2, rtol=5e-2), err_f

    print("KERNEL_OK")
</pallas_src>

<mosaic_0001>
module attributes {stable_mosaic.version = 11 : i64} {
  func.func @basic_block_kernel(%arg0: i32, %arg1: memref<1x18x18x4xf32, #tpu.memory_space<vmem>>, %arg2: memref<1x4xf32, #tpu.memory_space<vmem>>, %arg3: memref<1x4xf32, #tpu.memory_space<vmem>>, %arg4: memref<36x128xbf16, #tpu.memory_space<vmem>>, %arg5: memref<1x256x128xf32, #tpu.memory_space<vmem>>) attributes {dimension_semantics = [#tpu.dimension_semantics<parallel>], iteration_bounds = array<i64: 2>, scalar_prefetch = 0 : i64, scratch_operands = 0 : i64, tpu.core_type = #tpu.core_type<tc>, window_params = [{transform_indices = @transform_0, window_bounds = array<i64: 1, 18, 18, 4>}, {pipeline_mode = #tpu.pipeline_mode<synchronous>, transform_indices = @transform_1, window_bounds = array<i64: 1, 4>}, {pipeline_mode = #tpu.pipeline_mode<synchronous>, transform_indices = @transform_2, window_bounds = array<i64: 1, 4>}, {pipeline_mode = #tpu.pipeline_mode<synchronous>, transform_indices = @transform_3, window_bounds = array<i64: 36, 128>}, {transform_indices = @transform_4, window_bounds = array<i64: 1, 256, 128>}]} {
    %c0 = arith.constant 0 : index
    %c0_0 = arith.constant 0 : index
    %c0_1 = arith.constant 0 : index
    %c0_2 = arith.constant 0 : index
    %0 = vector.load %arg1[%c0, %c0_0, %c0_1, %c0_2] : memref<1x18x18x4xf32, #tpu.memory_space<vmem>>, vector<1x18x18x4xf32>
    %1 = vector.shape_cast %0 : vector<1x18x18x4xf32> to vector<18x18x4xf32>
    %c0_3 = arith.constant 0 : index
    %c0_4 = arith.constant 0 : index
    %2 = vector.load %arg2[%c0_3, %c0_4] : memref<1x4xf32, #tpu.memory_space<vmem>>, vector<1x4xf32>
    %3 = vector.shape_cast %2 : vector<1x4xf32> to vector<4xf32>
    %4 = vector.shape_cast %3 : vector<4xf32> to vector<1x1x4xf32>
    %5 = vector.broadcast %4 : vector<1x1x4xf32> to vector<18x18x4xf32>
    %6 = arith.mulf %1, %5 : vector<18x18x4xf32>
    %c0_5 = arith.constant 0 : index
    %c0_6 = arith.constant 0 : index
    %7 = vector.load %arg3[%c0_5, %c0_6] : memref<1x4xf32, #tpu.memory_space<vmem>>, vector<1x4xf32>
    %8 = vector.shape_cast %7 : vector<1x4xf32> to vector<4xf32>
    %9 = vector.shape_cast %8 : vector<4xf32> to vector<1x1x4xf32>
    %10 = vector.broadcast %9 : vector<1x1x4xf32> to vector<18x18x4xf32>
    %11 = arith.addf %6, %10 : vector<18x18x4xf32>
    %cst = arith.constant 0.000000e+00 : f32
    %12 = vector.broadcast %cst : f32 to vector<18x18x4xf32>
    %13 = arith.maximumf %11, %12 : vector<18x18x4xf32>
    %14 = tpu.iota {dimensions = array<i32: 0>} : vector<18x18x4xi32>
    %15 = tpu.iota {dimensions = array<i32: 1>} : vector<18x18x4xi32>
    %c1_i32 = arith.constant 1 : i32
    %16 = vector.broadcast %c1_i32 : i32 to vector<18x18x4xi32>
    %17 = arith.cmpi sge, %14, %16 : vector<18x18x4xi32>
    %c16_i32 = arith.constant 16 : i32
    %18 = vector.broadcast %c16_i32 : i32 to vector<18x18x4xi32>
    %19 = arith.cmpi sle, %14, %18 : vector<18x18x4xi32>
    %20 = arith.andi %17, %19 : vector<18x18x4xi1>
    %c1_i32_7 = arith.constant 1 : i32
    %21 = vector.broadcast %c1_i32_7 : i32 to vector<18x18x4xi32>
    %22 = arith.cmpi sge, %15, %21 : vector<18x18x4xi32>
    %23 = arith.andi %20, %22 : vector<18x18x4xi1>
    %c16_i32_8 = arith.constant 16 : i32
    %24 = vector.broadcast %c16_i32_8 : i32 to vector<18x18x4xi32>
    %25 = arith.cmpi sle, %15, %24 : vector<18x18x4xi32>
    %26 = arith.andi %23, %25 : vector<18x18x4xi1>
    %cst_9 = arith.constant 0.000000e+00 : f32
    %27 = vector.broadcast %cst_9 : f32 to vector<18x18x4xf32>
    %28 = arith.select %26, %13, %27 : vector<18x18x4xi1>, vector<18x18x4xf32>
    %29 = vector.extract_strided_slice %28 {offsets = [0, 0, 0], sizes = [16, 16, 4], strides = [1, 1, 1]} : vector<18x18x4xf32> to vector<16x16x4xf32>
    %30 = vector.extract_strided_slice %28 {offsets = [0, 1, 0], sizes = [16, 16, 4], strides = [1, 1, 1]} : vector<18x18x4xf32> to vector<16x16x4xf32>
    %31 = vector.extract_strided_slice %28 {offsets = [0, 2, 0], sizes = [16, 16, 4], strides = [1, 1, 1]} : vector<18x18x4xf32> to vector<16x16x4xf32>
    %32 = vector.extract_strided_slice %28 {offsets = [1, 0, 0], sizes = [16, 16, 4], strides = [1, 1, 1]} : vector<18x18x4xf32> to vector<16x16x4xf32>
    %33 = vector.extract_strided_slice %28 {offsets = [1, 1, 0], sizes = [16, 16, 4], strides = [1, 1, 1]} : vector<18x18x4xf32> to vector<16x16x4xf32>
    %34 = vector.extract_strided_slice %28 {offsets = [1, 2, 0], sizes = [16, 16, 4], strides = [1, 1, 1]} : vector<18x18x4xf32> to vector<16x16x4xf32>
    %35 = vector.extract_strided_slice %28 {offsets = [2, 0, 0], sizes = [16, 16, 4], strides = [1, 1, 1]} : vector<18x18x4xf32> to vector<16x16x4xf32>
    %36 = vector.extract_strided_slice %28 {offsets = [2, 1, 0], sizes = [16, 16, 4], strides = [1, 1, 1]} : vector<18x18x4xf32> to vector<16x16x4xf32>
    %37 = vector.extract_strided_slice %28 {offsets = [2, 2, 0], sizes = [16, 16, 4], strides = [1, 1, 1]} : vector<18x18x4xf32> to vector<16x16x4xf32>
    %38 = tpu.concatenate %29, %30, %31, %32, %33, %34, %35, %36, %37 in 2 : vector<16x16x4xf32>, vector<16x16x4xf32>, vector<16x16x4xf32>, vector<16x16x4xf32>, vector<16x16x4xf32>, vector<16x16x4xf32>, vector<16x16x4xf32>, vector<16x16x4xf32>, vector<16x16x4xf32> -> vector<16x16x36xf32>
    %39 = vector.shape_cast %38 : vector<16x16x36xf32> to vector<256x36xf32>
    %40 = arith.truncf %39 : vector<256x36xf32> to vector<256x36xbf16>
    %c0_10 = arith.constant 0 : index
    %c0_11 = arith.constant 0 : index
    %41 = vector.load %arg4[%c0_10, %c0_11] : memref<36x128xbf16, #tpu.memory_space<vmem>>, vector<36x128xbf16>
    %cst_12 = arith.constant dense<0.000000e+00> : vector<256x128xf32>
    %42 = tpu.matmul %40, %41, %cst_12 {dimension_numbers = #tpu.dot_dimension_numbers<[1], [0], [0], [1], [0, 0, 1, 1], [], []>} : vector<256x36xbf16>, vector<36x128xbf16>, vector<256x128xf32> -> vector<256x128xf32>
    %c0_13 = arith.constant 0 : index
    %c0_14 = arith.constant 0 : index
    %c0_15 = arith.constant 0 : index
    %43 = vector.load %arg5[%c0_13, %c0_14, %c0_15] : memref<1x256x128xf32, #tpu.memory_space<vmem>>, vector<1x256x128xf32>
    %44 = vector.shape_cast %43 : vector<1x256x128xf32> to vector<256x128xf32>
    %45 = vector.shape_cast %42 : vector<256x128xf32> to vector<1x256x128xf32>
    tpu.vector_store %arg5[%c0_13, %c0_14, %c0_15], %45 {strides = array<i32>} : memref<1x256x128xf32, #tpu.memory_space<vmem>>, vector<1x256x128xf32>,
    return
  }
  func.func @transform_0(%arg0: i32) -> (i32, i32, i32, i32) {
    %c0_i32 = arith.constant 0 : i32
    %c0_i32_0 = arith.constant 0 : i32
    %c0_i32_1 = arith.constant 0 : i32
    %c0_i32_2 = arith.constant 0 : i32
    return %arg0, %c0_i32, %c0_i32_0, %c0_i32_1 : i32, i32, i32, i32
  }
  func.func @transform_1(%arg0: i32) -> (i32, i32) {
    %c0_i32 = arith.constant 0 : i32
    %c0_i32_0 = arith.constant 0 : i32
    %c0_i32_1 = arith.constant 0 : i32
    return %c0_i32, %c0_i32_0 : i32, i32
  }
  func.func @transform_2(%arg0: i32) -> (i32, i32) {
    %c0_i32 = arith.constant 0 : i32
    %c0_i32_0 = arith.constant 0 : i32
    %c0_i32_1 = arith.constant 0 : i32
    return %c0_i32, %c0_i32_0 : i32, i32
  }
  func.func @transform_3(%arg0: i32) -> (i32, i32) {
    %c0_i32 = arith.constant 0 : i32
    %c0_i32_0 = arith.constant 0 : i32
    %c0_i32_1 = arith.constant 0 : i32
    return %c0_i32, %c0_i32_0 : i32, i32
  }
  func.func @transform_4(%arg0: i32) -> (i32, i32, i32) {
    %c0_i32 = arith.constant 0 : i32
    %c0_i32_0 = arith.constant 0 : i32
    %c0_i32_1 = arith.constant 0 : i32
    return %arg0, %c0_i32, %c0_i32_0 : i32, i32, i32
  }
}

</mosaic_0001>

<llo_original>
// kernel: tpu_custom_call.1
$region0: #{tpu_custom_call.1}
  #allocation0 [shape = 'u32[]', space=smem, size = 0x4, offset = 0x4, fixed_abs, tag = 'smem constant byte address 0x4 - core index']
  #allocation1 [shape = 'u32[144,128]{1,0:T(1,128)}', space=vmem, size = 0x12000, scoped, tag = 'internal scratch']
  %s0 = inlined_call_operand.vmem [shape: f32[2,18,18,4], index: 0, kind: input, shape index: {}]
  %s1 = inlined_call_operand.vmem [shape: f32[1,4], index: 1, kind: input, shape index: {}]
  %s2 = inlined_call_operand.vmem [shape: f32[1,4], index: 2, kind: input, shape index: {}]
  %s3 = inlined_call_operand.vmem [shape: bf16[36,128], index: 3, kind: input, shape index: {}]
  %s4 = inlined_call_operand.hbm [shape: f32[2,256,128], index: 4, kind: output, shape index: {}]
  %s5 = sld [smem:[#allocation0]]
  $region49: #{tpu_custom_call.1} parent=0
    _
  %s7 = ssub.s32 1, %s5
  %s8 = scalar_select 0, %s7, %s5
  $region1: #{tpu_custom_call.1} parent=0
    #allocation2 [shape = 'u8[262144]{0}', space=vmem, size = 0x40000, scoped, tag = 'output window, operand 0']
    #allocation3 [shape = 's32[2]{0}', space=sflag, size = 0x8, scoped, tag = 'scoped memory for tpu_custom_call.1']
    %9 = vsyncpa [#allocation3], 0
    %s10 = scalar_lea.sflag [#allocation3], 1
    %11 = vsyncpa %s10, 0
    loop: start=0, step=1, limit=4
    $region2: #{tpu_custom_call.1} parent=1 // loop_pre_header
      _
    $region3: #{tpu_custom_call.1} parent=1 // loop_header
      %s13 = sphi 0, %s17
      %p14 = scmp.ge.s32.totalorder %s13, 4
      %s23 = sphi 0, %s25
      %s26 = sphi 0, %s23
      %s27 = sphi 0, %s26
      %s43 = sphi 0, %s27
      %s47 = sphi 0, %s47
      %s49 = sphi 0, %s47
      %s50 = sphi 0, %s49
      %s64 = sphi 0, %s50
      %s68 = sphi 0, %s68
      %s70 = sphi 0, %s68
      %s71 = sphi 0, %s70
      %s85 = sphi 0, %s71
      %s89 = sphi 0, %s89
      %s91 = sphi 0, %s89
      %s92 = sphi 0, %s91
      %s106 = sphi 0, %s92
      %s112 = sphi 0, %s114
      %s115 = sphi 0, %s112
      %s116 = sphi 0, %s115
      %s132 = sphi 0, %s116
    $region4: #{tpu_custom_call.1} parent=1 // loop_header_branch
      %16 = sbr.rel (%p14) target = $region8
    $region5: #{tpu_custom_call.1} parent=1 // loop_body
      %s18 = ssub.s32 %s13, 1
      %s19 = ssub.s32 %s13, 2
      %s20 = sadd.s32 %s13, 1
      %s21 = ssub.s32 %s13, %s20
      %p22 = scmp.eq.s32.totalorder %s21, 0
      %s24 = sadd.s32 %s23, 1
      %s25 = scalar_select %p22, %s23, %s24
      %p28 = pneg %p22
      %p29 = scmp.eq.s32.totalorder %s13, 1
      %p30 = por %p28, %p29
      %p31 = scmp.ne.s32.totalorder %s23, %s26
      %p32 = scmp.eq.s32.totalorder %s13, 0
      %p33 = por %p31, %p32
      %p34 = scmp.ne.s32.totalorder %s23, %s26
      %p35 = scmp.eq.s32.totalorder %s18, 1
      %p36 = por %p34, %p35
      %p37 = scmp.ne.s32.totalorder %s26, %s27
      %p38 = scmp.eq.s32.totalorder %s18, 0
      %p39 = por %p37, %p38
      %p40 = scmp.ne.s32.totalorder %s26, %s27
      %p41 = scmp.eq.s32.totalorder %s19, 1
      %p42 = por %p40, %p41
      %p44 = scmp.ne.s32.totalorder %s27, %s43
      %p45 = scmp.eq.s32.totalorder %s19, 0
      %p46 = por %p44, %p45
      %s48 = sadd.s32 %s47, 1
      %p51 = scmp.eq.s32.totalorder %s13, 1
      %p52 = scmp.ne.s32.totalorder %s47, %s49
      %p53 = scmp.eq.s32.totalorder %s13, 0
      %p54 = por %p52, %p53
      %p55 = scmp.ne.s32.totalorder %s47, %s49
      %p56 = scmp.eq.s32.totalorder %s18, 1
      %p57 = por %p55, %p56
      %p58 = scmp.ne.s32.totalorder %s49, %s50
      %p59 = scmp.eq.s32.totalorder %s18, 0
      %p60 = por %p58, %p59
      %p61 = scmp.ne.s32.totalorder %s49, %s50
      %p62 = scmp.eq.s32.totalorder %s19, 1
      %p63 = por %p61, %p62
      %p65 = scmp.ne.s32.totalorder %s50, %s64
      %p66 = scmp.eq.s32.totalorder %s19, 0
      %p67 = por %p65, %p66
      %s69 = sadd.s32 %s68, 1
      %p72 = scmp.eq.s32.totalorder %s13, 1
      %p73 = scmp.ne.s32.totalorder %s68, %s70
      %p74 = scmp.eq.s32.totalorder %s13, 0
      %p75 = por %p73, %p74
      %p76 = scmp.ne.s32.totalorder %s68, %s70
      %p77 = scmp.eq.s32.totalorder %s18, 1
      %p78 = por %p76, %p77
      %p79 = scmp.ne.s32.totalorder %s70, %s71
      %p80 = scmp.eq.s32.totalorder %s18, 0
      %p81 = por %p79, %p80
      %p82 = scmp.ne.s32.totalorder %s70, %s71
      %p83 = scmp.eq.s32.totalorder %s19, 1
      %p84 = por %p82, %p83
      %p86 = scmp.ne.s32.totalorder %s71, %s85
      %p87 = scmp.eq.s32.totalorder %s19, 0
      %p88 = por %p86, %p87
      %s90 = sadd.s32 %s89, 1
      %p93 = scmp.eq.s32.totalorder %s13, 1
      %p94 = scmp.ne.s32.totalorder %s89, %s91
      %p95 = scmp.eq.s32.totalorder %s13, 0
      %p96 = por %p94, %p95
      %p97 = scmp.ne.s32.totalorder %s89, %s91
      %p98 = scmp.eq.s32.totalorder %s18, 1
      %p99 = por %p97, %p98
      %p100 = scmp.ne.s32.totalorder %s91, %s92
      %p101 = scmp.eq.s32.totalorder %s18, 0
      %p102 = por %p100, %p101
      %p103 = scmp.ne.s32.totalorder %s91, %s92
      %p104 = scmp.eq.s32.totalorder %s19, 1
      %p105 = por %p103, %p104
      %p107 = scmp.ne.s32.totalorder %s92, %s106
      %p108 = scmp.eq.s32.totalorder %s19, 0
      %p109 = por %p107, %p108
      %s110 = ssub.s32 %s13, %s20
      %p111 = scmp.eq.s32.totalorder %s110, 0
      %s113 = sadd.s32 %s112, 1
      %s114 = scalar_select %p111, %s112, %s113
      %p117 = pneg %p111
      %p118 = scmp.eq.s32.totalorder %s13, 1
      %p119 = por %p117, %p118
      %p120 = scmp.ne.s32.totalorder %s112, %s115
      %p121 = scmp.eq.s32.totalorder %s13, 0
      %p122 = por %p120, %p121
      %p123 = scmp.ne.s32.totalorder %s112, %s115
      %p124 = scmp.eq.s32.totalorder %s18, 1
      %p125 = por %p123, %p124
      %p126 = scmp.ne.s32.totalorder %s115, %s116
      %p127 = scmp.eq.s32.totalorder %s18, 0
      %p128 = por %p126, %p127
      %p129 = scmp.ne.s32.totalorder %s115, %s116
      %p130 = scmp.eq.s32.totalorder %s19, 1
      %p131 = por %p129, %p130
      %p133 = scmp.ne.s32.totalorder %s116, %s132
      %p134 = scmp.eq.s32.totalorder %s19, 0
      %p135 = por %p133, %p134
      %p136 = scmp.le.s32.totalorder 1, %s13
      %p137 = scmp.lt.s32.totalorder %s13, 3
      %p138 = pnand %p136, %p137
      %p139 = pneg %p138
      // Predicated region
      $region9: #{tpu_custom_call.1} parent=5 // pred_check
        _
      $region10: #{tpu_custom_call.1} parent=5 // pred_check_branch
        %141 = sbr.rel (%p138) target = $region12
      $region11: #{tpu_custom_call.1} parent=5 // pred_region
        %s142 = ssub.s32 %s13, 1
        // Predicated region
        $region13: #{tpu_custom_call.1} parent=11 // pred_check
          %p143 = pneg %p60
        $region14: #{tpu_custom_call.1} parent=11 // pred_check_branch
          %145 = sbr.rel (%p143) target = $region16
        $region15: #{tpu_custom_call.1} parent=11 // pred_region
          _
        $region16: #{tpu_custom_call.1} parent=11 // pred_fallthru
          _
        // Predicated region
        $region17: #{tpu_custom_call.1} parent=11 // pred_check
          %p146 = pneg %p81
        $region18: #{tpu_custom_call.1} parent=11 // pred_check_branch
          %148 = sbr.rel (%p146) target = $region20
        $region19: #{tpu_custom_call.1} parent=11 // pred_region
          _
        $region20: #{tpu_custom_call.1} parent=11 // pred_fallthru
          _
        // Predicated region
        $region21: #{tpu_custom_call.1} parent=11 // pred_check
          %p149 = pneg %p102
        $region22: #{tpu_custom_call.1} parent=11 // pred_check_branch
          %151 = sbr.rel (%p149) target = $region24
        $region23: #{tpu_custom_call.1} parent=11 // pred_region
          _
        $region24: #{tpu_custom_call.1} parent=11 // pred_fallthru
          _
      $region12: #{tpu_custom_call.1} parent=5 // pred_fallthru
        _
      %p152 = scmp.lt.s32.totalorder %s13, 2
      // Predicated region
      $region25: #{tpu_custom_call.1} parent=5 // pred_check
        %p153 = pneg %p152
      $region26: #{tpu_custom_call.1} parent=5 // pred_check_branch
        %155 = sbr.rel (%p153) target = $region28
      $region27: #{tpu_custom_call.1} parent=5 // pred_region
        // Predicated region
        $region29: #{tpu_custom_call.1} parent=27 // pred_check
          %p156 = pneg %p33
        $region30: #{tpu_custom_call.1} parent=27 // pred_check_branch
          %158 = sbr.rel (%p156) target = $region32
        $region31: #{tpu_custom_call.1} parent=27 // pred_region
          %p159 = scmp.lt.s32.totalorder %s13, 1
          %s160 = scalar_select %p159, %s13, 1
          %s161 = smul.addr %s160, 54
          %s162 = smul.addr %s161, 8
          %s163 = scalar_lea.vmem %s0, %s162
        $region32: #{tpu_custom_call.1} parent=27 // pred_fallthru
          _
      $region28: #{tpu_custom_call.1} parent=5 // pred_fallthru
        _
      %p164 = scmp.le.s32.totalorder 1, %s13
      %p165 = scmp.lt.s32.totalorder %s13, 3
      %p166 = pnand %p164, %p165
      %p167 = pneg %p166
      // Predicated region
      $region33: #{tpu_custom_call.1} parent=5 // pred_check
        _
      $region34: #{tpu_custom_call.1} parent=5 // pred_check_branch
        %169 = sbr.rel (%p166) target = $region36
      $region35: #{tpu_custom_call.1} parent=5 // pred_region
        %s170 = ssub.s32 %s13, 1
        %p171 = scmp.lt.s32.totalorder %s18, 1
        %s172 = scalar_select %p171, %s18, 1
        %s173 = smul.addr %s172, 54
        %s174 = smul.addr %s173, 8
        %s175 = scalar_lea.vmem %s0, %s174
        %p176 = pneg %p39
        %p177 = pneg %p36
        %p178 = pneg %p60
        %p179 = pneg %p57
        %p180 = pneg %p81
        %p181 = pneg %p78
        %p182 = pneg %p102
        %p183 = pneg %p99
        %p184 = pneg %p128
        %p185 = pneg %p125
        %s186 = sand.u32 %s115, 1
        %s187 = scalar_lea.sflag [#allocation3], %s186
        %s188 = sand.u32 %s115, 1
        %s189 = smul.addr %s188, 256
        %s190 = scalar_lea.vmem [#allocation2], %s189
        %p191 = scmp.lt.s32.totalorder %s18, 1
        %s192 = scalar_select %p191, %s18, 1
        %s193 = smul.addr %s192, 54
        %s194 = smul.addr %s193, 8
        %s195 = scalar_lea.vmem %s0, %s194
        %v197 = vld [vmem:[%s195] sm:$0xff]
        %v198 = vld [vmem:[%s195 + $0x8] sm:$0xff]
        %v199 = vld [vmem:[%s195 + $0x10] sm:$0x3]
        %v200 = vld [vmem:[%s195 + $0x18] sm:$0xff]
        %v201 = vld [vmem:[%s195 + $0x20] sm:$0xff]
        %v202 = vld [vmem:[%s195 + $0x28] sm:$0x3]
        %v203 = vld [vmem:[%s195 + $0x30] sm:$0xff]
        %v204 = vld [vmem:[%s195 + $0x38] sm:$0xff]
        %v205 = vld [vmem:[%s195 + $0x40] sm:$0x3]
        %v206 = vld [vmem:[%s195 + $0x48] sm:$0xff]
        %v207 = vld [vmem:[%s195 + $0x50] sm:$0xff]
        %v208 = vld [vmem:[%s195 + $0x58] sm:$0x3]
        %v209 = vld [vmem:[%s195 + $0x60] sm:$0xff]
        %v210 = vld [vmem:[%s195 + $0x68] sm:$0xff]
        %v211 = vld [vmem:[%s195 + $0x70] sm:$0x3]
        %v212 = vld [vmem:[%s195 + $0x78] sm:$0xff]
        %v213 = vld [vmem:[%s195 + $0x80] sm:$0xff]
        %v214 = vld [vmem:[%s195 + $0x88] sm:$0x3]
        %v215 = vld [vmem:[%s195 + $0x90] sm:$0xff]
        %v216 = vld [vmem:[%s195 + $0x98] sm:$0xff]
        %v217 = vld [vmem:[%s195 + $0xa0] sm:$0x3]
        %v218 = vld [vmem:[%s195 + $0xa8] sm:$0xff]
        %v219 = vld [vmem:[%s195 + $0xb0] sm:$0xff]
        %v220 = vld [vmem:[%s195 + $0xb8] sm:$0x3]
        %v221 = vld [vmem:[%s195 + $0xc0] sm:$0xff]
        %v222 = vld [vmem:[%s195 + $0xc8] sm:$0xff]
        %v223 = vld [vmem:[%s195 + $0xd0] sm:$0x3]
        %v224 = vld [vmem:[%s195 + $0xd8] sm:$0xff]
        %v225 = vld [vmem:[%s195 + $0xe0] sm:$0xff]
        %v226 = vld [vmem:[%s195 + $0xe8] sm:$0x3]
        %v227 = vld [vmem:[%s195 + $0xf0] sm:$0xff]
        %v228 = vld [vmem:[%s195 + $0xf8] sm:$0xff]
        %v229 = vld [vmem:[%s195 + $0x100] sm:$0x3]
        %v230 = vld [vmem:[%s195 + $0x108] sm:$0xff]
        %v231 = vld [vmem:[%s195 + $0x110] sm:$0xff]
        %v232 = vld [vmem:[%s195 + $0x118] sm:$0x3]
        %v233 = vld [vmem:[%s195 + $0x120] sm:$0xff]
        %v234 = vld [vmem:[%s195 + $0x128] sm:$0xff]
        %v235 = vld [vmem:[%s195 + $0x130] sm:$0x3]
        %v236 = vld [vmem:[%s195 + $0x138] sm:$0xff]
        %v237 = vld [vmem:[%s195 + $0x140] sm:$0xff]
        %v238 = vld [vmem:[%s195 + $0x148] sm:$0x3]
        %v239 = vld [vmem:[%s195 + $0x150] sm:$0xff]
        %v240 = vld [vmem:[%s195 + $0x158] sm:$0xff]
        %v241 = vld [vmem:[%s195 + $0x160] sm:$0x3]
        %v242 = vld [vmem:[%s195 + $0x168] sm:$0xff]
        %v243 = vld [vmem:[%s195 + $0x170] sm:$0xff]
        %v244 = vld [vmem:[%s195 + $0x178] sm:$0x3]
        %v245 = vld [vmem:[%s195 + $0x180] sm:$0xff]
        %v246 = vld [vmem:[%s195 + $0x188] sm:$0xff]
        %v247 = vld [vmem:[%s195 + $0x190] sm:$0x3]
        %v248 = vld [vmem:[%s195 + $0x198] sm:$0xff]
        %v249 = vld [vmem:[%s195 + $0x1a0] sm:$0xff]
        %v250 = vld [vmem:[%s195 + $0x1a8] sm:$0x3]
        %v251 = vld [vmem:[%s1] sm:$0x1]
        %v253 = vlaneseq
        %v254 = vshrl.u32 %v253, 7
        %v255 = vsub.s32 0, %v254
        %v256 = vrot.slane %v251, %v255
        %v258 = vmul.f32 %v197, %v256
        %v259 = vmul.f32 %v198, %v256
        %v260 = vmul.f32 %v199, %v256
        %v261 = vmul.f32 %v200, %v256
        %v262 = vmul.f32 %v201, %v256
        %v263 = vmul.f32 %v202, %v256
        %v264 = vmul.f32 %v203, %v256
        %v265 = vmul.f32 %v204, %v256
        %v266 = vmul.f32 %v205, %v256
        %v267 = vmul.f32 %v206, %v256
        %v268 = vmul.f32 %v207, %v256
        %v269 = vmul.f32 %v208, %v256
        %v270 = vmul.f32 %v209, %v256
        %v271 = vmul.f32 %v210, %v256
        %v272 = vmul.f32 %v211, %v256
        %v273 = vmul.f32 %v212, %v256
        %v274 = vmul.f32 %v213, %v256
        %v275 = vmul.f32 %v214, %v256
        %v276 = vmul.f32 %v215, %v256
        %v277 = vmul.f32 %v216, %v256
        %v278 = vmul.f32 %v217, %v256
        %v279 = vmul.f32 %v218, %v256
        %v280 = vmul.f32 %v219, %v256
        %v281 = vmul.f32 %v220, %v256
        %v282 = vmul.f32 %v221, %v256
        %v283 = vmul.f32 %v222, %v256
        %v284 = vmul.f32 %v223, %v256
        %v285 = vmul.f32 %v224, %v256
        %v286 = vmul.f32 %v225, %v256
        %v287 = vmul.f32 %v226, %v256
        %v288 = vmul.f32 %v227, %v256
        %v289 = vmul.f32 %v228, %v256
        %v290 = vmul.f32 %v229, %v256
        %v291 = vmul.f32 %v230, %v256
        %v292 = vmul.f32 %v231, %v256
        %v293 = vmul.f32 %v232, %v256
        %v294 = vmul.f32 %v233, %v256
        %v295 = vmul.f32 %v234, %v256
        %v296 = vmul.f32 %v235, %v256
        %v297 = vmul.f32 %v236, %v256
        %v298 = vmul.f32 %v237, %v256
        %v299 = vmul.f32 %v238, %v256
        %v300 = vmul.f32 %v239, %v256
        %v301 = vmul.f32 %v240, %v256
        %v302 = vmul.f32 %v241, %v256
        %v303 = vmul.f32 %v242, %v256
        %v304 = vmul.f32 %v243, %v256
        %v305 = vmul.f32 %v244, %v256
        %v306 = vmul.f32 %v245, %v256
        %v307 = vmul.f32 %v246, %v256
        %v308 = vmul.f32 %v247, %v256
        %v309 = vmul.f32 %v248, %v256
        %v310 = vmul.f32 %v249, %v256
        %v311 = vmul.f32 %v250, %v256
        %v312 = vld [vmem:[%s2] sm:$0x1]
        %v314 = vlaneseq
        %v315 = vshrl.u32 %v314, 7
        %v316 = vsub.s32 0, %v315
        %v317 = vrot.slane %v312, %v316
        %v319 = vadd.f32 %v258, %v317
        %v320 = vadd.f32 %v259, %v317
        %v321 = vadd.f32 %v260, %v317
        %v322 = vadd.f32 %v261, %v317
        %v323 = vadd.f32 %v262, %v317
        %v324 = vadd.f32 %v263, %v317
        %v325 = vadd.f32 %v264, %v317
        %v326 = vadd.f32 %v265, %v317
        %v327 = vadd.f32 %v266, %v317
        %v328 = vadd.f32 %v267, %v317
        %v329 = vadd.f32 %v268, %v317
        %v330 = vadd.f32 %v269, %v317
        %v331 = vadd.f32 %v270, %v317
        %v332 = vadd.f32 %v271, %v317
        %v333 = vadd.f32 %v272, %v317
        %v334 = vadd.f32 %v273, %v317
        %v335 = vadd.f32 %v274, %v317
        %v336 = vadd.f32 %v275, %v317
        %v337 = vadd.f32 %v276, %v317
        %v338 = vadd.f32 %v277, %v317
        %v339 = vadd.f32 %v278, %v317
        %v340 = vadd.f32 %v279, %v317
        %v341 = vadd.f32 %v280, %v317
        %v342 = vadd.f32 %v281, %v317
        %v343 = vadd.f32 %v282, %v317
        %v344 = vadd.f32 %v283, %v317
        %v345 = vadd.f32 %v284, %v317
        %v346 = vadd.f32 %v285, %v317
        %v347 = vadd.f32 %v286, %v317
        %v348 = vadd.f32 %v287, %v317
        %v349 = vadd.f32 %v288, %v317
        %v350 = vadd.f32 %v289, %v317
        %v351 = vadd.f32 %v290, %v317
        %v352 = vadd.f32 %v291, %v317
        %v353 = vadd.f32 %v292, %v317
        %v354 = vadd.f32 %v293, %v317
        %v355 = vadd.f32 %v294, %v317
        %v356 = vadd.f32 %v295, %v317
        %v357 = vadd.f32 %v296, %v317
        %v358 = vadd.f32 %v297, %v317
        %v359 = vadd.f32 %v298, %v317
        %v360 = vadd.f32 %v299, %v317
        %v361 = vadd.f32 %v300, %v317
        %v362 = vadd.f32 %v301, %v317
        %v363 = vadd.f32 %v302, %v317
        %v364 = vadd.f32 %v303, %v317
        %v365 = vadd.f32 %v304, %v317
        %v366 = vadd.f32 %v305, %v317
        %v367 = vadd.f32 %v306, %v317
        %v368 = vadd.f32 %v307, %v317
        %v369 = vadd.f32 %v308, %v317
        %v370 = vadd.f32 %v309, %v317
        %v371 = vadd.f32 %v310, %v317
        %v372 = vadd.f32 %v311, %v317
        %v373 = vmax.f32 %v319, 0.0
        %v374 = vmax.f32 %v320, 0.0
        %v375 = vmax.f32 %v321, 0.0
        %v376 = vmax.f32 %v322, 0.0
        %v377 = vmax.f32 %v323, 0.0
        %v378 = vmax.f32 %v324, 0.0
        %v379 = vmax.f32 %v325, 0.0
        %v380 = vmax.f32 %v326, 0.0
        %v381 = vmax.f32 %v327, 0.0
        %v382 = vmax.f32 %v328, 0.0
        %v383 = vmax.f32 %v329, 0.0
        %v384 = vmax.f32 %v330, 0.0
        %v385 = vmax.f32 %v331, 0.0
        %v386 = vmax.f32 %v332, 0.0
        %v387 = vmax.f32 %v333, 0.0
        %v388 = vmax.f32 %v334, 0.0
        %v389 = vmax.f32 %v335, 0.0
        %v390 = vmax.f32 %v336, 0.0
        %v391 = vmax.f32 %v337, 0.0
        %v392 = vmax.f32 %v338, 0.0
        %v393 = vmax.f32 %v339, 0.0
        %v394 = vmax.f32 %v340, 0.0
        %v395 = vmax.f32 %v341, 0.0
        %v396 = vmax.f32 %v342, 0.0
        %v397 = vmax.f32 %v343, 0.0
        %v398 = vmax.f32 %v344, 0.0
        %v399 = vmax.f32 %v345, 0.0
        %v400 = vmax.f32 %v346, 0.0
        %v401 = vmax.f32 %v347, 0.0
        %v402 = vmax.f32 %v348, 0.0
        %v403 = vmax.f32 %v349, 0.0
        %v404 = vmax.f32 %v350, 0.0
        %v405 = vmax.f32 %v351, 0.0
        %v406 = vmax.f32 %v352, 0.0
        %v407 = vmax.f32 %v353, 0.0
        %v408 = vmax.f32 %v354, 0.0
        %v409 = vmax.f32 %v355, 0.0
        %v410 = vmax.f32 %v356, 0.0
        %v411 = vmax.f32 %v357, 0.0
        %v412 = vmax.f32 %v358, 0.0
        %v413 = vmax.f32 %v359, 0.0
        %v414 = vmax.f32 %v360, 0.0
        %v415 = vmax.f32 %v361, 0.0
        %v416 = vmax.f32 %v362, 0.0
        %v417 = vmax.f32 %v363, 0.0
        %v418 = vmax.f32 %v364, 0.0
        %v419 = vmax.f32 %v365, 0.0
        %v420 = vmax.f32 %v366, 0.0
        %v421 = vmax.f32 %v367, 0.0
        %v422 = vmax.f32 %v368, 0.0
        %v423 = vmax.f32 %v369, 0.0
        %v424 = vmax.f32 %v370, 0.0
        %v425 = vmax.f32 %v371, 0.0
        %v426 = vmax.f32 %v372, 0.0
        %v427 = vlaneseq
        %v428 = vshrl.u32 %v427, 7
        %v429 = vadd.s32 %v428, 8
        %v430 = vadd.s32 %v428, 16
        %vm431 = vcmp.ge.s32.totalorder %v428, 1
        %vm432 = vcmp.ge.s32.totalorder %v429, 1
        %vm433 = vcmp.ge.s32.totalorder %v430, 1
        %vm434 = vmand 0, %vm431
        %vm435 = vmand 0, %vm432
        %vm436 = vmand 0, %vm433
        %vm437 = vmand 1, %vm431
        %vm438 = vmand 1, %vm432
        %vm439 = vmand 1, %vm433
        %vm440 = vcmp.le.s32.totalorder %v428, 16
        %vm441 = vcmp.le.s32.totalorder %v429, 16
        %vm442 = vcmp.le.s32.totalorder %v430, 16
        %vm443 = vmand %vm434, %vm440
        %vm444 = vmand %vm435, %vm441
        %vm445 = vmand %vm436, %vm442
        %vm446 = vmand %vm437, %vm440
        %vm447 = vmand %vm438, %vm441
        %vm448 = vmand %vm439, %vm442
        %v449 = vsel %vm443, %v373, 0.0
        %v450 = vsel %vm444, %v374, 0.0
        %v451 = vsel %vm445, %v375, 0.0
        %v452 = vsel %vm446, %v376, 0.0
        %v453 = vsel %vm447, %v377, 0.0
        %v454 = vsel %vm448, %v378, 0.0
        %v455 = vsel %vm446, %v379, 0.0
        %v456 = vsel %vm447, %v380, 0.0
        %v457 = vsel %vm448, %v381, 0.0
        %v458 = vsel %vm446, %v382, 0.0
        %v459 = vsel %vm447, %v383, 0.0
        %v460 = vsel %vm448, %v384, 0.0
        %v461 = vsel %vm446, %v385, 0.0
        %v462 = vsel %vm447, %v386, 0.0
        %v463 = vsel %vm448, %v387, 0.0
        %v464 = vsel %vm446, %v388, 0.0
        %v465 = vsel %vm447, %v389, 0.0
        %v466 = vsel %vm448, %v390, 0.0
        %v467 = vsel %vm446, %v391, 0.0
        %v468 = vsel %vm447, %v392, 0.0
        %v469 = vsel %vm448, %v393, 0.0
        %v470 = vsel %vm446, %v394, 0.0
        %v471 = vsel %vm447, %v395, 0.0
        %v472 = vsel %vm448, %v396, 0.0
        %v473 = vsel %vm446, %v397, 0.0
        %v474 = vsel %vm447, %v398, 0.0
        %v475 = vsel %vm448, %v399, 0.0
        %v476 = vsel %vm446, %v400, 0.0
        %v477 = vsel %vm447, %v401, 0.0
        %v478 = vsel %vm448, %v402, 0.0
        %v479 = vsel %vm446, %v403, 0.0
        %v480 = vsel %vm447, %v404, 0.0
        %v481 = vsel %vm448, %v405, 0.0
        %v482 = vsel %vm446, %v406, 0.0
        %v483 = vsel %vm447, %v407, 0.0
        %v484 = vsel %vm448, %v408, 0.0
        %v485 = vsel %vm446, %v409, 0.0
        %v486 = vsel %vm447, %v410, 0.0
        %v487 = vsel %vm448, %v411, 0.0
        %v488 = vsel %vm446, %v412, 0.0
        %v489 = vsel %vm447, %v413, 0.0
        %v490 = vsel %vm448, %v414, 0.0
        %v491 = vsel %vm446, %v415, 0.0
        %v492 = vsel %vm447, %v416, 0.0
        %v493 = vsel %vm448, %v417, 0.0
        %v494 = vsel %vm446, %v418, 0.0
        %v495 = vsel %vm447, %v419, 0.0
        %v496 = vsel %vm448, %v420, 0.0
        %v497 = vsel %vm446, %v421, 0.0
        %v498 = vsel %vm447, %v422, 0.0
        %v499 = vsel %vm448, %v423, 0.0
        %v500 = vsel %vm443, %v424, 0.0
        %v501 = vsel %vm444, %v425, 0.0
        %v502 = vsel %vm445, %v426, 0.0
        %vm551 = vcmask 1046528
        %v552 = vrot.slane %v449, 1
        %v553 = vrot.slane %v450, 1
        %v554 = vsel %vm551, %v552, %v553
        %v555 = vrot.slane %v451, 1
        %v556 = vsel %vm551, %v553, %v555
        %v557 = vrot.slane %v452, 1
        %v558 = vrot.slane %v453, 1
        %v559 = vsel %vm551, %v557, %v558
        %v560 = vrot.slane %v454, 1
        %v561 = vsel %vm551, %v558, %v560
        %v562 = vrot.slane %v455, 1
        %v563 = vrot.slane %v456, 1
        %v564 = vsel %vm551, %v562, %v563
        %v565 = vrot.slane %v457, 1
        %v566 = vsel %vm551, %v563, %v565
        %v567 = vrot.slane %v458, 1
        %v568 = vrot.slane %v459, 1
        %v569 = vsel %vm551, %v567, %v568
        %v570 = vrot.slane %v460, 1
        %v571 = vsel %vm551, %v568, %v570
        %v572 = vrot.slane %v461, 1
        %v573 = vrot.slane %v462, 1
        %v574 = vsel %vm551, %v572, %v573
        %v575 = vrot.slane %v463, 1
        %v576 = vsel %vm551, %v573, %v575
        %v577 = vrot.slane %v464, 1
        %v578 = vrot.slane %v465, 1
        %v579 = vsel %vm551, %v577, %v578
        %v580 = vrot.slane %v466, 1
        %v581 = vsel %vm551, %v578, %v580
        %v582 = vrot.slane %v467, 1
        %v583 = vrot.slane %v468, 1
        %v584 = vsel %vm551, %v582, %v583
        %v585 = vrot.slane %v469, 1
        %v586 = vsel %vm551, %v583, %v585
        %v587 = vrot.slane %v470, 1
        %v588 = vrot.slane %v471, 1
        %v589 = vsel %vm551, %v587, %v588
        %v590 = vrot.slane %v472, 1
        %v591 = vsel %vm551, %v588, %v590
        %v592 = vrot.slane %v473, 1
        %v593 = vrot.slane %v474, 1
        %v594 = vsel %vm551, %v592, %v593
        %v595 = vrot.slane %v475, 1
        %v596 = vsel %vm551, %v593, %v595
        %v597 = vrot.slane %v476, 1
        %v598 = vrot.slane %v477, 1
        %v599 = vsel %vm551, %v597, %v598
        %v600 = vrot.slane %v478, 1
        %v601 = vsel %vm551, %v598, %v600
        %v602 = vrot.slane %v479, 1
        %v603 = vrot.slane %v480, 1
        %v604 = vsel %vm551, %v602, %v603
        %v605 = vrot.slane %v481, 1
        %v606 = vsel %vm551, %v603, %v605
        %v607 = vrot.slane %v482, 1
        %v608 = vrot.slane %v483, 1
        %v609 = vsel %vm551, %v607, %v608
        %v610 = vrot.slane %v484, 1
        %v611 = vsel %vm551, %v608, %v610
        %v612 = vrot.slane %v485, 1
        %v613 = vrot.slane %v486, 1
        %v614 = vsel %vm551, %v612, %v613
        %v615 = vrot.slane %v487, 1
        %v616 = vsel %vm551, %v613, %v615
        %v617 = vrot.slane %v488, 1
        %v618 = vrot.slane %v489, 1
        %v619 = vsel %vm551, %v617, %v618
        %v620 = vrot.slane %v490, 1
        %v621 = vsel %vm551, %v618, %v620
        %v622 = vrot.slane %v491, 1
        %v623 = vrot.slane %v492, 1
        %v624 = vsel %vm551, %v622, %v623
        %v625 = vrot.slane %v493, 1
        %v626 = vsel %vm551, %v623, %v625
        %v627 = vrot.slane %v494, 1
        %v628 = vrot.slane %v495, 1
        %v629 = vsel %vm551, %v627, %v628
        %v630 = vrot.slane %v496, 1
        %v631 = vsel %vm551, %v628, %v630
        %632 = vrot.lane.b32.xlu0 %v554, 4
        %v633 = vpop.permute.xlu0 %632
        %634 = vrot.lane.b32.xlu0 %v556, 4
        %v635 = vpop.permute.xlu0 %634
        %636 = vrot.lane.b32.xlu0 %v559, 4
        %v637 = vpop.permute.xlu0 %636
        %638 = vrot.lane.b32.xlu0 %v561, 4
        %v639 = vpop.permute.xlu0 %638
        %640 = vrot.lane.b32.xlu0 %v564, 4
        %v641 = vpop.permute.xlu0 %640
        %642 = vrot.lane.b32.xlu0 %v566, 4
        %v643 = vpop.permute.xlu0 %642
        %644 = vrot.lane.b32.xlu0 %v569, 4
        %v645 = vpop.permute.xlu0 %644
        %646 = vrot.lane.b32.xlu0 %v571, 4
        %v647 = vpop.permute.xlu0 %646
        %648 = vrot.lane.b32.xlu0 %v574, 4
        %v649 = vpop.permute.xlu0 %648
        %650 = vrot.lane.b32.xlu0 %v576, 4
        %v651 = vpop.permute.xlu0 %650
        %652 = vrot.lane.b32.xlu0 %v579, 4
        %v653 = vpop.permute.xlu0 %652
        %654 = vrot.lane.b32.xlu0 %v581, 4
        %v655 = vpop.permute.xlu0 %654
        %656 = vrot.lane.b32.xlu0 %v584, 4
        %v657 = vpop.permute.xlu0 %656
        %658 = vrot.lane.b32.xlu0 %v586, 4
        %v659 = vpop.permute.xlu0 %658
        %660 = vrot.lane.b32.xlu0 %v589, 4
        %v661 = vpop.permute.xlu0 %660
        %662 = vrot.lane.b32.xlu0 %v591, 4
        %v663 = vpop.permute.xlu0 %662
        %664 = vrot.lane.b32.xlu0 %v594, 4
        %v665 = vpop.permute.xlu0 %664
        %666 = vrot.lane.b32.xlu0 %v596, 4
        %v667 = vpop.permute.xlu0 %666
        %668 = vrot.lane.b32.xlu0 %v599, 4
        %v669 = vpop.permute.xlu0 %668
        %670 = vrot.lane.b32.xlu0 %v601, 4
        %v671 = vpop.permute.xlu0 %670
        %672 = vrot.lane.b32.xlu0 %v604, 4
        %v673 = vpop.permute.xlu0 %672
        %674 = vrot.lane.b32.xlu0 %v606, 4
        %v675 = vpop.permute.xlu0 %674
        %676 = vrot.lane.b32.xlu0 %v609, 4
        %v677 = vpop.permute.xlu0 %676
        %678 = vrot.lane.b32.xlu0 %v611, 4
        %v679 = vpop.permute.xlu0 %678
        %680 = vrot.lane.b32.xlu0 %v614, 4
        %v681 = vpop.permute.xlu0 %680
        %682 = vrot.lane.b32.xlu0 %v616, 4
        %v683 = vpop.permute.xlu0 %682
        %684 = vrot.lane.b32.xlu0 %v619, 4
        %v685 = vpop.permute.xlu0 %684
        %686 = vrot.lane.b32.xlu0 %v621, 4
        %v687 = vpop.permute.xlu0 %686
        %688 = vrot.lane.b32.xlu0 %v624, 4
        %v689 = vpop.permute.xlu0 %688
        %690 = vrot.lane.b32.xlu0 %v626, 4
        %v691 = vpop.permute.xlu0 %690
        %692 = vrot.lane.b32.xlu0 %v629, 4
        %v693 = vpop.permute.xlu0 %692
        %694 = vrot.lane.b32.xlu0 %v631, 4
        %v695 = vpop.permute.xlu0 %694
        %vm728 = vcmask 1045504
        %v729 = vrot.slane %v449, 2
        %v730 = vrot.slane %v450, 2
        %v731 = vsel %vm728, %v729, %v730
        %v732 = vrot.slane %v451, 2
        %v733 = vsel %vm728, %v730, %v732
        %v734 = vrot.slane %v452, 2
        %v735 = vrot.slane %v453, 2
        %v736 = vsel %vm728, %v734, %v735
        %v737 = vrot.slane %v454, 2
        %v738 = vsel %vm728, %v735, %v737
        %v739 = vrot.slane %v455, 2
        %v740 = vrot.slane %v456, 2
        %v741 = vsel %vm728, %v739, %v740
        %v742 = vrot.slane %v457, 2
        %v743 = vsel %vm728, %v740, %v742
        %v744 = vrot.slane %v458, 2
        %v745 = vrot.slane %v459, 2
        %v746 = vsel %vm728, %v744, %v745
        %v747 = vrot.slane %v460, 2
        %v748 = vsel %vm728, %v745, %v747
        %v749 = vrot.slane %v461, 2
        %v750 = vrot.slane %v462, 2
        %v751 = vsel %vm728, %v749, %v750
        %v752 = vrot.slane %v463, 2
        %v753 = vsel %vm728, %v750, %v752
        %v754 = vrot.slane %v464, 2
        %v755 = vrot.slane %v465, 2
        %v756 = vsel %vm728, %v754, %v755
        %v757 = vrot.slane %v466, 2
        %v758 = vsel %vm728, %v755, %v757
        %v759 = vrot.slane %v467, 2
        %v760 = vrot.slane %v468, 2
        %v761 = vsel %vm728, %v759, %v760
        %v762 = vrot.slane %v469, 2
        %v763 = vsel %vm728, %v760, %v762
        %v764 = vrot.slane %v470, 2
        %v765 = vrot.slane %v471, 2
        %v766 = vsel %vm728, %v764, %v765
        %v767 = vrot.slane %v472, 2
        %v768 = vsel %vm728, %v765, %v767
        %v769 = vrot.slane %v473, 2
        %v770 = vrot.slane %v474, 2
        %v771 = vsel %vm728, %v769, %v770
        %v772 = vrot.slane %v475, 2
        %v773 = vsel %vm728, %v770, %v772
        %v774 = vrot.slane %v476, 2
        %v775 = vrot.slane %v477, 2
        %v776 = vsel %vm728, %v774, %v775
        %v777 = vrot.slane %v478, 2
        %v778 = vsel %vm728, %v775, %v777
        %v779 = vrot.slane %v479, 2
        %v780 = vrot.slane %v480, 2
        %v781 = vsel %vm728, %v779, %v780
        %v782 = vrot.slane %v481, 2
        %v783 = vsel %vm728, %v780, %v782
        %v784 = vrot.slane %v482, 2
        %v785 = vrot.slane %v483, 2
        %v786 = vsel %vm728, %v784, %v785
        %v787 = vrot.slane %v484, 2
        %v788 = vsel %vm728, %v785, %v787
        %v789 = vrot.slane %v485, 2
        %v790 = vrot.slane %v486, 2
        %v791 = vsel %vm728, %v789, %v790
        %v792 = vrot.slane %v487, 2
        %v793 = vsel %vm728, %v790, %v792
        %v794 = vrot.slane %v488, 2
        %v795 = vrot.slane %v489, 2
        %v796 = vsel %vm728, %v794, %v795
        %v797 = vrot.slane %v490, 2
        %v798 = vsel %vm728, %v795, %v797
        %v799 = vrot.slane %v491, 2
        %v800 = vrot.slane %v492, 2
        %v801 = vsel %vm728, %v799, %v800
        %v802 = vrot.slane %v493, 2
        %v803 = vsel %vm728, %v800, %v802
        %v804 = vrot.slane %v494, 2
        %v805 = vrot.slane %v495, 2
        %v806 = vsel %vm728, %v804, %v805
        %v807 = vrot.slane %v496, 2
        %v808 = vsel %vm728, %v805, %v807
        %809 = vrot.lane.b32.xlu0 %v731, 8
        %v810 = vpop.permute.xlu0 %809
        %811 = vrot.lane.b32.xlu0 %v733, 8
        %v812 = vpop.permute.xlu0 %811
        %813 = vrot.lane.b32.xlu0 %v736, 8
        %v814 = vpop.permute.xlu0 %813
        %815 = vrot.lane.b32.xlu0 %v738, 8
        %v816 = vpop.permute.xlu0 %815
        %817 = vrot.lane.b32.xlu0 %v741, 8
        %v818 = vpop.permute.xlu0 %817
        %819 = vrot.lane.b32.xlu0 %v743, 8
        %v820 = vpop.permute.xlu0 %819
        %821 = vrot.lane.b32.xlu0 %v746, 8
        %v822 = vpop.permute.xlu0 %821
        %823 = vrot.lane.b32.xlu0 %v748, 8
        %v824 = vpop.permute.xlu0 %823
        %825 = vrot.lane.b32.xlu0 %v751, 8
        %v826 = vpop.permute.xlu0 %825
        %827 = vrot.lane.b32.xlu0 %v753, 8
        %v828 = vpop.permute.xlu0 %827
        %829 = vrot.lane.b32.xlu0 %v756, 8
        %v830 = vpop.permute.xlu0 %829
        %831 = vrot.lane.b32.xlu0 %v758, 8
        %v832 = vpop.permute.xlu0 %831
        %833 = vrot.lane.b32.xlu0 %v761, 8
        %v834 = vpop.permute.xlu0 %833
        %835 = vrot.lane.b32.xlu0 %v763, 8
        %v836 = vpop.permute.xlu0 %835
        %837 = vrot.lane.b32.xlu0 %v766, 8
        %v838 = vpop.permute.xlu0 %837
        %839 = vrot.lane.b32.xlu0 %v768, 8
        %v840 = vpop.permute.xlu0 %839
        %841 = vrot.lane.b32.xlu0 %v771, 8
        %v842 = vpop.permute.xlu0 %841
        %843 = vrot.lane.b32.xlu0 %v773, 8
        %v844 = vpop.permute.xlu0 %843
        %845 = vrot.lane.b32.xlu0 %v776, 8
        %v846 = vpop.permute.xlu0 %845
        %847 = vrot.lane.b32.xlu0 %v778, 8
        %v848 = vpop.permute.xlu0 %847
        %849 = vrot.lane.b32.xlu0 %v781, 8
        %v850 = vpop.permute.xlu0 %849
        %851 = vrot.lane.b32.xlu0 %v783, 8
        %v852 = vpop.permute.xlu0 %851
        %853 = vrot.lane.b32.xlu0 %v786, 8
        %v854 = vpop.permute.xlu0 %853
        %855 = vrot.lane.b32.xlu0 %v788, 8
        %v856 = vpop.permute.xlu0 %855
        %857 = vrot.lane.b32.xlu0 %v791, 8
        %v858 = vpop.permute.xlu0 %857
        %859 = vrot.lane.b32.xlu0 %v793, 8
        %v860 = vpop.permute.xlu0 %859
        %861 = vrot.lane.b32.xlu0 %v796, 8
        %v862 = vpop.permute.xlu0 %861
        %863 = vrot.lane.b32.xlu0 %v798, 8
        %v864 = vpop.permute.xlu0 %863
        %865 = vrot.lane.b32.xlu0 %v801, 8
        %v866 = vpop.permute.xlu0 %865
        %867 = vrot.lane.b32.xlu0 %v803, 8
        %v868 = vpop.permute.xlu0 %867
        %869 = vrot.lane.b32.xlu0 %v806, 8
        %v870 = vpop.permute.xlu0 %869
        %871 = vrot.lane.b32.xlu0 %v808, 8
        %v872 = vpop.permute.xlu0 %871
        %907 = vrot.lane.b32.xlu0 %v452, 12
        %v908 = vpop.permute.xlu0 %907
        %909 = vrot.lane.b32.xlu0 %v453, 12
        %v910 = vpop.permute.xlu0 %909
        %911 = vrot.lane.b32.xlu0 %v455, 12
        %v912 = vpop.permute.xlu0 %911
        %913 = vrot.lane.b32.xlu0 %v456, 12
        %v914 = vpop.permute.xlu0 %913
        %915 = vrot.lane.b32.xlu0 %v458, 12
        %v916 = vpop.permute.xlu0 %915
        %917 = vrot.lane.b32.xlu0 %v459, 12
        %v918 = vpop.permute.xlu0 %917
        %919 = vrot.lane.b32.xlu0 %v461, 12
        %v920 = vpop.permute.xlu0 %919
        %921 = vrot.lane.b32.xlu0 %v462, 12
        %v922 = vpop.permute.xlu0 %921
        %923 = vrot.lane.b32.xlu0 %v464, 12
        %v924 = vpop.permute.xlu0 %923
        %925 = vrot.lane.b32.xlu0 %v465, 12
        %v926 = vpop.permute.xlu0 %925
        %927 = vrot.lane.b32.xlu0 %v467, 12
        %v928 = vpop.permute.xlu0 %927
        %929 = vrot.lane.b32.xlu0 %v468, 12
        %v930 = vpop.permute.xlu0 %929
        %931 = vrot.lane.b32.xlu0 %v470, 12
        %v932 = vpop.permute.xlu0 %931
        %933 = vrot.lane.b32.xlu0 %v471, 12
        %v934 = vpop.permute.xlu0 %933
        %935 = vrot.lane.b32.xlu0 %v473, 12
        %v936 = vpop.permute.xlu0 %935
        %937 = vrot.lane.b32.xlu0 %v474, 12
        %v938 = vpop.permute.xlu0 %937
        %939 = vrot.lane.b32.xlu0 %v476, 12
        %v940 = vpop.permute.xlu0 %939
        %941 = vrot.lane.b32.xlu0 %v477, 12
        %v942 = vpop.permute.xlu0 %941
        %943 = vrot.lane.b32.xlu0 %v479, 12
        %v944 = vpop.permute.xlu0 %943
        %945 = vrot.lane.b32.xlu0 %v480, 12
        %v946 = vpop.permute.xlu0 %945
        %947 = vrot.lane.b32.xlu0 %v482, 12
        %v948 = vpop.permute.xlu0 %947
        %949 = vrot.lane.b32.xlu0 %v483, 12
        %v950 = vpop.permute.xlu0 %949
        %951 = vrot.lane.b32.xlu0 %v485, 12
        %v952 = vpop.permute.xlu0 %951
        %953 = vrot.lane.b32.xlu0 %v486, 12
        %v954 = vpop.permute.xlu0 %953
        %955 = vrot.lane.b32.xlu0 %v488, 12
        %v956 = vpop.permute.xlu0 %955
        %957 = vrot.lane.b32.xlu0 %v489, 12
        %v958 = vpop.permute.xlu0 %957
        %959 = vrot.lane.b32.xlu0 %v491, 12
        %v960 = vpop.permute.xlu0 %959
        %961 = vrot.lane.b32.xlu0 %v492, 12
        %v962 = vpop.permute.xlu0 %961
        %963 = vrot.lane.b32.xlu0 %v494, 12
        %v964 = vpop.permute.xlu0 %963
        %965 = vrot.lane.b32.xlu0 %v495, 12
        %v966 = vpop.permute.xlu0 %965
        %967 = vrot.lane.b32.xlu0 %v497, 12
        %v968 = vpop.permute.xlu0 %967
        %969 = vrot.lane.b32.xlu0 %v498, 12
        %v970 = vpop.permute.xlu0 %969
        %v1004 = vrot.slane %v497, 1
        %v1005 = vrot.slane %v498, 1
        %v1006 = vsel %vm551, %v1004, %v1005
        %v1007 = vrot.slane %v499, 1
        %v1008 = vsel %vm551, %v1005, %v1007
        %1009 = vrot.lane.b32.xlu0 %v559, 16
        %v1010 = vpop.permute.xlu0 %1009
        %1011 = vrot.lane.b32.xlu0 %v561, 16
        %v1012 = vpop.permute.xlu0 %1011
        %1013 = vrot.lane.b32.xlu0 %v564, 16
        %v1014 = vpop.permute.xlu0 %1013
        %1015 = vrot.lane.b32.xlu0 %v566, 16
        %v1016 = vpop.permute.xlu0 %1015
        %1017 = vrot.lane.b32.xlu0 %v569, 16
        %v1018 = vpop.permute.xlu0 %1017
        %1019 = vrot.lane.b32.xlu0 %v571, 16
        %v1020 = vpop.permute.xlu0 %1019
        %1021 = vrot.lane.b32.xlu0 %v574, 16
        %v1022 = vpop.permute.xlu0 %1021
        %1023 = vrot.lane.b32.xlu0 %v576, 16
        %v1024 = vpop.permute.xlu0 %1023
        %1025 = vrot.lane.b32.xlu0 %v579, 16
        %v1026 = vpop.permute.xlu0 %1025
        %1027 = vrot.lane.b32.xlu0 %v581, 16
        %v1028 = vpop.permute.xlu0 %1027
        %1029 = vrot.lane.b32.xlu0 %v584, 16
        %v1030 = vpop.permute.xlu0 %1029
        %1031 = vrot.lane.b32.xlu0 %v586, 16
        %v1032 = vpop.permute.xlu0 %1031
        %1033 = vrot.lane.b32.xlu0 %v589, 16
        %v1034 = vpop.permute.xlu0 %1033
        %1035 = vrot.lane.b32.xlu0 %v591, 16
        %v1036 = vpop.permute.xlu0 %1035
        %1037 = vrot.lane.b32.xlu0 %v594, 16
        %v1038 = vpop.permute.xlu0 %1037
        %1039 = vrot.lane.b32.xlu0 %v596, 16
        %v1040 = vpop.permute.xlu0 %1039
        %1041 = vrot.lane.b32.xlu0 %v599, 16
        %v1042 = vpop.permute.xlu0 %1041
        %1043 = vrot.lane.b32.xlu0 %v601, 16
        %v1044 = vpop.permute.xlu0 %1043
        %1045 = vrot.lane.b32.xlu0 %v604, 16
        %v1046 = vpop.permute.xlu0 %1045
        %1047 = vrot.lane.b32.xlu0 %v606, 16
        %v1048 = vpop.permute.xlu0 %1047
        %1049 = vrot.lane.b32.xlu0 %v609, 16
        %v1050 = vpop.permute.xlu0 %1049
        %1051 = vrot.lane.b32.xlu0 %v611, 16
        %v1052 = vpop.permute.xlu0 %1051
        %1053 = vrot.lane.b32.xlu0 %v614, 16
        %v1054 = vpop.permute.xlu0 %1053
        %1055 = vrot.lane.b32.xlu0 %v616, 16
        %v1056 = vpop.permute.xlu0 %1055
        %1057 = vrot.lane.b32.xlu0 %v619, 16
        %v1058 = vpop.permute.xlu0 %1057
        %1059 = vrot.lane.b32.xlu0 %v621, 16
        %v1060 = vpop.permute.xlu0 %1059
        %1061 = vrot.lane.b32.xlu0 %v624, 16
        %v1062 = vpop.permute.xlu0 %1061
        %1063 = vrot.lane.b32.xlu0 %v626, 16
        %v1064 = vpop.permute.xlu0 %1063
        %1065 = vrot.lane.b32.xlu0 %v629, 16
        %v1066 = vpop.permute.xlu0 %1065
        %1067 = vrot.lane.b32.xlu0 %v631, 16
        %v1068 = vpop.permute.xlu0 %1067
        %1069 = vrot.lane.b32.xlu0 %v1006, 16
        %v1070 = vpop.permute.xlu0 %1069
        %1071 = vrot.lane.b32.xlu0 %v1008, 16
        %v1072 = vpop.permute.xlu0 %1071
        %v1105 = vrot.slane %v497, 2
        %v1106 = vrot.slane %v498, 2
        %v1107 = vsel %vm728, %v1105, %v1106
        %v1108 = vrot.slane %v499, 2
        %v1109 = vsel %vm728, %v1106, %v1108
        %1110 = vrot.lane.b32.xlu0 %v736, 20
        %v1111 = vpop.permute.xlu0 %1110
        %1112 = vrot.lane.b32.xlu0 %v738, 20
        %v1113 = vpop.permute.xlu0 %1112
        %1114 = vrot.lane.b32.xlu0 %v741, 20
        %v1115 = vpop.permute.xlu0 %1114
        %1116 = vrot.lane.b32.xlu0 %v743, 20
        %v1117 = vpop.permute.xlu0 %1116
        %1118 = vrot.lane.b32.xlu0 %v746, 20
        %v1119 = vpop.permute.xlu0 %1118
        %1120 = vrot.lane.b32.xlu0 %v748, 20
        %v1121 = vpop.permute.xlu0 %1120
        %1122 = vrot.lane.b32.xlu0 %v751, 20
        %v1123 = vpop.permute.xlu0 %1122
        %1124 = vrot.lane.b32.xlu0 %v753, 20
        %v1125 = vpop.permute.xlu0 %1124
        %1126 = vrot.lane.b32.xlu0 %v756, 20
        %v1127 = vpop.permute.xlu0 %1126
        %1128 = vrot.lane.b32.xlu0 %v758, 20
        %v1129 = vpop.permute.xlu0 %1128
        %1130 = vrot.lane.b32.xlu0 %v761, 20
        %v1131 = vpop.permute.xlu0 %1130
        %1132 = vrot.lane.b32.xlu0 %v763, 20
        %v1133 = vpop.permute.xlu0 %1132
        %1134 = vrot.lane.b32.xlu0 %v766, 20
        %v1135 = vpop.permute.xlu0 %1134
        %1136 = vrot.lane.b32.xlu0 %v768, 20
        %v1137 = vpop.permute.xlu0 %1136
        %1138 = vrot.lane.b32.xlu0 %v771, 20
        %v1139 = vpop.permute.xlu0 %1138
        %1140 = vrot.lane.b32.xlu0 %v773, 20
        %v1141 = vpop.permute.xlu0 %1140
        %1142 = vrot.lane.b32.xlu0 %v776, 20
        %v1143 = vpop.permute.xlu0 %1142
        %1144 = vrot.lane.b32.xlu0 %v778, 20
        %v1145 = vpop.permute.xlu0 %1144
        %1146 = vrot.lane.b32.xlu0 %v781, 20
        %v1147 = vpop.permute.xlu0 %1146
        %1148 = vrot.lane.b32.xlu0 %v783, 20
        %v1149 = vpop.permute.xlu0 %1148
        %1150 = vrot.lane.b32.xlu0 %v786, 20
        %v1151 = vpop.permute.xlu0 %1150
        %1152 = vrot.lane.b32.xlu0 %v788, 20
        %v1153 = vpop.permute.xlu0 %1152
        %1154 = vrot.lane.b32.xlu0 %v791, 20
        %v1155 = vpop.permute.xlu0 %1154
        %1156 = vrot.lane.b32.xlu0 %v793, 20
        %v1157 = vpop.permute.xlu0 %1156
        %1158 = vrot.lane.b32.xlu0 %v796, 20
        %v1159 = vpop.permute.xlu0 %1158
        %1160 = vrot.lane.b32.xlu0 %v798, 20
        %v1161 = vpop.permute.xlu0 %1160
        %1162 = vrot.lane.b32.xlu0 %v801, 20
        %v1163 = vpop.permute.xlu0 %1162
        %1164 = vrot.lane.b32.xlu0 %v803, 20
        %v1165 = vpop.permute.xlu0 %1164
        %1166 = vrot.lane.b32.xlu0 %v806, 20
        %v1167 = vpop.permute.xlu0 %1166
        %1168 = vrot.lane.b32.xlu0 %v808, 20
        %v1169 = vpop.permute.xlu0 %1168
        %1170 = vrot.lane.b32.xlu0 %v1107, 20
        %v1171 = vpop.permute.xlu0 %1170
        %1172 = vrot.lane.b32.xlu0 %v1109, 20
        %v1173 = vpop.permute.xlu0 %1172
        %1208 = vrot.lane.b32.xlu0 %v455, 24
        %v1209 = vpop.permute.xlu0 %1208
        %1210 = vrot.lane.b32.xlu0 %v456, 24
        %v1211 = vpop.permute.xlu0 %1210
        %1212 = vrot.lane.b32.xlu0 %v458, 24
        %v1213 = vpop.permute.xlu0 %1212
        %1214 = vrot.lane.b32.xlu0 %v459, 24
        %v1215 = vpop.permute.xlu0 %1214
        %1216 = vrot.lane.b32.xlu0 %v461, 24
        %v1217 = vpop.permute.xlu0 %1216
        %1218 = vrot.lane.b32.xlu0 %v462, 24
        %v1219 = vpop.permute.xlu0 %1218
        %1220 = vrot.lane.b32.xlu0 %v464, 24
        %v1221 = vpop.permute.xlu0 %1220
        %1222 = vrot.lane.b32.xlu0 %v465, 24
        %v1223 = vpop.permute.xlu0 %1222
        %1224 = vrot.lane.b32.xlu0 %v467, 24
        %v1225 = vpop.permute.xlu0 %1224
        %1226 = vrot.lane.b32.xlu0 %v468, 24
        %v1227 = vpop.permute.xlu0 %1226
        %1228 = vrot.lane.b32.xlu0 %v470, 24
        %v1229 = vpop.permute.xlu0 %1228
        %1230 = vrot.lane.b32.xlu0 %v471, 24
        %v1231 = vpop.permute.xlu0 %1230
        %1232 = vrot.lane.b32.xlu0 %v473, 24
        %v1233 = vpop.permute.xlu0 %1232
        %1234 = vrot.lane.b32.xlu0 %v474, 24
        %v1235 = vpop.permute.xlu0 %1234
        %1236 = vrot.lane.b32.xlu0 %v476, 24
        %v1237 = vpop.permute.xlu0 %1236
        %1238 = vrot.lane.b32.xlu0 %v477, 24
        %v1239 = vpop.permute.xlu0 %1238
        %1240 = vrot.lane.b32.xlu0 %v479, 24
        %v1241 = vpop.permute.xlu0 %1240
        %1242 = vrot.lane.b32.xlu0 %v480, 24
        %v1243 = vpop.permute.xlu0 %1242
        %1244 = vrot.lane.b32.xlu0 %v482, 24
        %v1245 = vpop.permute.xlu0 %1244
        %1246 = vrot.lane.b32.xlu0 %v483, 24
        %v1247 = vpop.permute.xlu0 %1246
        %1248 = vrot.lane.b32.xlu0 %v485, 24
        %v1249 = vpop.permute.xlu0 %1248
        %1250 = vrot.lane.b32.xlu0 %v486, 24
        %v1251 = vpop.permute.xlu0 %1250
        %1252 = vrot.lane.b32.xlu0 %v488, 24
        %v1253 = vpop.permute.xlu0 %1252
        %1254 = vrot.lane.b32.xlu0 %v489, 24
        %v1255 = vpop.permute.xlu0 %1254
        %1256 = vrot.lane.b32.xlu0 %v491, 24
        %v1257 = vpop.permute.xlu0 %1256
        %1258 = vrot.lane.b32.xlu0 %v492, 24
        %v1259 = vpop.permute.xlu0 %1258
        %1260 = vrot.lane.b32.xlu0 %v494, 24
        %v1261 = vpop.permute.xlu0 %1260
        %1262 = vrot.lane.b32.xlu0 %v495, 24
        %v1263 = vpop.permute.xlu0 %1262
        %1264 = vrot.lane.b32.xlu0 %v497, 24
        %v1265 = vpop.permute.xlu0 %1264
        %1266 = vrot.lane.b32.xlu0 %v498, 24
        %v1267 = vpop.permute.xlu0 %1266
        %1268 = vrot.lane.b32.xlu0 %v500, 24
        %v1269 = vpop.permute.xlu0 %1268
        %1270 = vrot.lane.b32.xlu0 %v501, 24
        %v1271 = vpop.permute.xlu0 %1270
        %v1305 = vrot.slane %v500, 1
        %v1306 = vrot.slane %v501, 1
        %v1307 = vsel %vm551, %v1305, %v1306
        %v1308 = vrot.slane %v502, 1
        %v1309 = vsel %vm551, %v1306, %v1308
        %1310 = vrot.lane.b32.xlu0 %v564, 28
        %v1311 = vpop.permute.xlu0 %1310
        %1312 = vrot.lane.b32.xlu0 %v566, 28
        %v1313 = vpop.permute.xlu0 %1312
        %1314 = vrot.lane.b32.xlu0 %v569, 28
        %v1315 = vpop.permute.xlu0 %1314
        %1316 = vrot.lane.b32.xlu0 %v571, 28
        %v1317 = vpop.permute.xlu0 %1316
        %1318 = vrot.lane.b32.xlu0 %v574, 28
        %v1319 = vpop.permute.xlu0 %1318
        %1320 = vrot.lane.b32.xlu0 %v576, 28
        %v1321 = vpop.permute.xlu0 %1320
        %1322 = vrot.lane.b32.xlu0 %v579, 28
        %v1323 = vpop.permute.xlu0 %1322
        %1324 = vrot.lane.b32.xlu0 %v581, 28
        %v1325 = vpop.permute.xlu0 %1324
        %1326 = vrot.lane.b32.xlu0 %v584, 28
        %v1327 = vpop.permute.xlu0 %1326
        %1328 = vrot.lane.b32.xlu0 %v586, 28
        %v1329 = vpop.permute.xlu0 %1328
        %1330 = vrot.lane.b32.xlu0 %v589, 28
        %v1331 = vpop.permute.xlu0 %1330
        %1332 = vrot.lane.b32.xlu0 %v591, 28
        %v1333 = vpop.permute.xlu0 %1332
        %1334 = vrot.lane.b32.xlu0 %v594, 28
        %v1335 = vpop.permute.xlu0 %1334
        %1336 = vrot.lane.b32.xlu0 %v596, 28
        %v1337 = vpop.permute.xlu0 %1336
        %1338 = vrot.lane.b32.xlu0 %v599, 28
        %v1339 = vpop.permute.xlu0 %1338
        %1340 = vrot.lane.b32.xlu0 %v601, 28
        %v1341 = vpop.permute.xlu0 %1340
        %1342 = vrot.lane.b32.xlu0 %v604, 28
        %v1343 = vpop.permute.xlu0 %1342
        %1344 = vrot.lane.b32.xlu0 %v606, 28
        %v1345 = vpop.permute.xlu0 %1344
        %1346 = vrot.lane.b32.xlu0 %v609, 28
        %v1347 = vpop.permute.xlu0 %1346
        %1348 = vrot.lane.b32.xlu0 %v611, 28
        %v1349 = vpop.permute.xlu0 %1348
        %1350 = vrot.lane.b32.xlu0 %v614, 28
        %v1351 = vpop.permute.xlu0 %1350
        %1352 = vrot.lane.b32.xlu0 %v616, 28
        %v1353 = vpop.permute.xlu0 %1352
        %1354 = vrot.lane.b32.xlu0 %v619, 28
        %v1355 = vpop.permute.xlu0 %1354
        %1356 = vrot.lane.b32.xlu0 %v621, 28
        %v1357 = vpop.permute.xlu0 %1356
        %1358 = vrot.lane.b32.xlu0 %v624, 28
        %v1359 = vpop.permute.xlu0 %1358
        %1360 = vrot.lane.b32.xlu0 %v626, 28
        %v1361 = vpop.permute.xlu0 %1360
        %1362 = vrot.lane.b32.xlu0 %v629, 28
        %v1363 = vpop.permute.xlu0 %1362
        %1364 = vrot.lane.b32.xlu0 %v631, 28
        %v1365 = vpop.permute.xlu0 %1364
        %1366 = vrot.lane.b32.xlu0 %v1006, 28
        %v1367 = vpop.permute.xlu0 %1366
        %1368 = vrot.lane.b32.xlu0 %v1008, 28
        %v1369 = vpop.permute.xlu0 %1368
        %1370 = vrot.lane.b32.xlu0 %v1307, 28
        %v1371 = vpop.permute.xlu0 %1370
        %1372 = vrot.lane.b32.xlu0 %v1309, 28
        %v1373 = vpop.permute.xlu0 %1372
        %v1406 = vrot.slane %v500, 2
        %v1407 = vrot.slane %v501, 2
        %v1408 = vsel %vm728, %v1406, %v1407
        %v1409 = vrot.slane %v502, 2
        %v1410 = vsel %vm728, %v1407, %v1409
        %1411 = vrot.lane.b32.xlu0 %v741, 32
        %v1412 = vpop.permute.xlu0 %1411
        %1413 = vrot.lane.b32.xlu0 %v743, 32
        %v1414 = vpop.permute.xlu0 %1413
        %1415 = vrot.lane.b32.xlu0 %v746, 32
        %v1416 = vpop.permute.xlu0 %1415
        %1417 = vrot.lane.b32.xlu0 %v748, 32
        %v1418 = vpop.permute.xlu0 %1417
        %1419 = vrot.lane.b32.xlu0 %v751, 32
        %v1420 = vpop.permute.xlu0 %1419
        %1421 = vrot.lane.b32.xlu0 %v753, 32
        %v1422 = vpop.permute.xlu0 %1421
        %1423 = vrot.lane.b32.xlu0 %v756, 32
        %v1424 = vpop.permute.xlu0 %1423
        %1425 = vrot.lane.b32.xlu0 %v758, 32
        %v1426 = vpop.permute.xlu0 %1425
        %1427 = vrot.lane.b32.xlu0 %v761, 32
        %v1428 = vpop.permute.xlu0 %1427
        %1429 = vrot.lane.b32.xlu0 %v763, 32
        %v1430 = vpop.permute.xlu0 %1429
        %1431 = vrot.lane.b32.xlu0 %v766, 32
        %v1432 = vpop.permute.xlu0 %1431
        %1433 = vrot.lane.b32.xlu0 %v768, 32
        %v1434 = vpop.permute.xlu0 %1433
        %1435 = vrot.lane.b32.xlu0 %v771, 32
        %v1436 = vpop.permute.xlu0 %1435
        %1437 = vrot.lane.b32.xlu0 %v773, 32
        %v1438 = vpop.permute.xlu0 %1437
        %1439 = vrot.lane.b32.xlu0 %v776, 32
        %v1440 = vpop.permute.xlu0 %1439
        %1441 = vrot.lane.b32.xlu0 %v778, 32
        %v1442 = vpop.permute.xlu0 %1441
        %1443 = vrot.lane.b32.xlu0 %v781, 32
        %v1444 = vpop.permute.xlu0 %1443
        %1445 = vrot.lane.b32.xlu0 %v783, 32
        %v1446 = vpop.permute.xlu0 %1445
        %1447 = vrot.lane.b32.xlu0 %v786, 32
        %v1448 = vpop.permute.xlu0 %1447
        %1449 = vrot.lane.b32.xlu0 %v788, 32
        %v1450 = vpop.permute.xlu0 %1449
        %1451 = vrot.lane.b32.xlu0 %v791, 32
        %v1452 = vpop.permute.xlu0 %1451
        %1453 = vrot.lane.b32.xlu0 %v793, 32
        %v1454 = vpop.permute.xlu0 %1453
        %1455 = vrot.lane.b32.xlu0 %v796, 32
        %v1456 = vpop.permute.xlu0 %1455
        %1457 = vrot.lane.b32.xlu0 %v798, 32
        %v1458 = vpop.permute.xlu0 %1457
        %1459 = vrot.lane.b32.xlu0 %v801, 32
        %v1460 = vpop.permute.xlu0 %1459
        %1461 = vrot.lane.b32.xlu0 %v803, 32
        %v1462 = vpop.permute.xlu0 %1461
        %1463 = vrot.lane.b32.xlu0 %v806, 32
        %v1464 = vpop.permute.xlu0 %1463
        %1465 = vrot.lane.b32.xlu0 %v808, 32
        %v1466 = vpop.permute.xlu0 %1465
        %1467 = vrot.lane.b32.xlu0 %v1107, 32
        %v1468 = vpop.permute.xlu0 %1467
        %1469 = vrot.lane.b32.xlu0 %v1109, 32
        %v1470 = vpop.permute.xlu0 %1469
        %1471 = vrot.lane.b32.xlu0 %v1408, 32
        %v1472 = vpop.permute.xlu0 %1471
        %1473 = vrot.lane.b32.xlu0 %v1410, 32
        %v1474 = vpop.permute.xlu0 %1473
        %vm1507 = vcmask 31744
        %v1508 = vsel %vm1507, %v449, %v633
        %v1509 = vsel %vm1507, %v450, %v635
        %v1510 = vsel %vm1507, %v452, %v637
        %v1511 = vsel %vm1507, %v453, %v639
        %v1512 = vsel %vm1507, %v455, %v641
        %v1513 = vsel %vm1507, %v456, %v643
        %v1514 = vsel %vm1507, %v458, %v645
        %v1515 = vsel %vm1507, %v459, %v647
        %v1516 = vsel %vm1507, %v461, %v649
        %v1517 = vsel %vm1507, %v462, %v651
        %v1518 = vsel %vm1507, %v464, %v653
        %v1519 = vsel %vm1507, %v465, %v655
        %v1520 = vsel %vm1507, %v467, %v657
        %v1521 = vsel %vm1507, %v468, %v659
        %v1522 = vsel %vm1507, %v470, %v661
        %v1523 = vsel %vm1507, %v471, %v663
        %v1524 = vsel %vm1507, %v473, %v665
        %v1525 = vsel %vm1507, %v474, %v667
        %v1526 = vsel %vm1507, %v476, %v669
        %v1527 = vsel %vm1507, %v477, %v671
        %v1528 = vsel %vm1507, %v479, %v673
        %v1529 = vsel %vm1507, %v480, %v675
        %v1530 = vsel %vm1507, %v482, %v677
        %v1531 = vsel %vm1507, %v483, %v679
        %v1532 = vsel %vm1507, %v485, %v681
        %v1533 = vsel %vm1507, %v486, %v683
        %v1534 = vsel %vm1507, %v488, %v685
        %v1535 = vsel %vm1507, %v489, %v687
        %v1536 = vsel %vm1507, %v491, %v689
        %v1537 = vsel %vm1507, %v492, %v691
        %v1538 = vsel %vm1507, %v494, %v693
        %v1539 = vsel %vm1507, %v495, %v695
        %vm1540 = vcmask 64512
        %v1541 = vsel %vm1540, %v1508, %v810
        %v1542 = vsel %vm1540, %v1509, %v812
        %v1543 = vsel %vm1540, %v1510, %v814
        %v1544 = vsel %vm1540, %v1511, %v816
        %v1545 = vsel %vm1540, %v1512, %v818
        %v1546 = vsel %vm1540, %v1513, %v820
        %v1547 = vsel %vm1540, %v1514, %v822
        %v1548 = vsel %vm1540, %v1515, %v824
        %v1549 = vsel %vm1540, %v1516, %v826
        %v1550 = vsel %vm1540, %v1517, %v828
        %v1551 = vsel %vm1540, %v1518, %v830
        %v1552 = vsel %vm1540, %v1519, %v832
        %v1553 = vsel %vm1540, %v1520, %v834
        %v1554 = vsel %vm1540, %v1521, %v836
        %v1555 = vsel %vm1540, %v1522, %v838
        %v1556 = vsel %vm1540, %v1523, %v840
        %v1557 = vsel %vm1540, %v1524, %v842
        %v1558 = vsel %vm1540, %v1525, %v844
        %v1559 = vsel %vm1540, %v1526, %v846
        %v1560 = vsel %vm1540, %v1527, %v848
        %v1561 = vsel %vm1540, %v1528, %v850
        %v1562 = vsel %vm1540, %v1529, %v852
        %v1563 = vsel %vm1540, %v1530, %v854
        %v1564 = vsel %vm1540, %v1531, %v856
        %v1565 = vsel %vm1540, %v1532, %v858
        %v1566 = vsel %vm1540, %v1533, %v860
        %v1567 = vsel %vm1540, %v1534, %v862
        %v1568 = vsel %vm1540, %v1535, %v864
        %v1569 = vsel %vm1540, %v1536, %v866
        %v1570 = vsel %vm1540, %v1537, %v868
        %v1571 = vsel %vm1540, %v1538, %v870
        %v1572 = vsel %vm1540, %v1539, %v872
        %vm1573 = vcmask 97280
        %v1574 = vsel %vm1573, %v1541, %v908
        %v1575 = vsel %vm1573, %v1542, %v910
        %v1576 = vsel %vm1573, %v1543, %v912
        %v1577 = vsel %vm1573, %v1544, %v914
        %v1578 = vsel %vm1573, %v1545, %v916
        %v1579 = vsel %vm1573, %v1546, %v918
        %v1580 = vsel %vm1573, %v1547, %v920
        %v1581 = vsel %vm1573, %v1548, %v922
        %v1582 = vsel %vm1573, %v1549, %v924
        %v1583 = vsel %vm1573, %v1550, %v926
        %v1584 = vsel %vm1573, %v1551, %v928
        %v1585 = vsel %vm1573, %v1552, %v930
        %v1586 = vsel %vm1573, %v1553, %v932
        %v1587 = vsel %vm1573, %v1554, %v934
        %v1588 = vsel %vm1573, %v1555, %v936
        %v1589 = vsel %vm1573, %v1556, %v938
        %v1590 = vsel %vm1573, %v1557, %v940
        %v1591 = vsel %vm1573, %v1558, %v942
        %v1592 = vsel %vm1573, %v1559, %v944
        %v1593 = vsel %vm1573, %v1560, %v946
        %v1594 = vsel %vm1573, %v1561, %v948
        %v1595 = vsel %vm1573, %v1562, %v950
        %v1596 = vsel %vm1573, %v1563, %v952
        %v1597 = vsel %vm1573, %v1564, %v954
        %v1598 = vsel %vm1573, %v1565, %v956
        %v1599 = vsel %vm1573, %v1566, %v958
        %v1600 = vsel %vm1573, %v1567, %v960
        %v1601 = vsel %vm1573, %v1568, %v962
        %v1602 = vsel %vm1573, %v1569, %v964
        %v1603 = vsel %vm1573, %v1570, %v966
        %v1604 = vsel %vm1573, %v1571, %v968
        %v1605 = vsel %vm1573, %v1572, %v970
        %vm1606 = vcmask 130048
        %v1607 = vsel %vm1606, %v1574, %v1010
        %v1608 = vsel %vm1606, %v1575, %v1012
        %v1609 = vsel %vm1606, %v1576, %v1014
        %v1610 = vsel %vm1606, %v1577, %v1016
        %v1611 = vsel %vm1606, %v1578, %v1018
        %v1612 = vsel %vm1606, %v1579, %v1020
        %v1613 = vsel %vm1606, %v1580, %v1022
        %v1614 = vsel %vm1606, %v1581, %v1024
        %v1615 = vsel %vm1606, %v1582, %v1026
        %v1616 = vsel %vm1606, %v1583, %v1028
        %v1617 = vsel %vm1606, %v1584, %v1030
        %v1618 = vsel %vm1606, %v1585, %v1032
        %v1619 = vsel %vm1606, %v1586, %v1034
        %v1620 = vsel %vm1606, %v1587, %v1036
        %v1621 = vsel %vm1606, %v1588, %v1038
        %v1622 = vsel %vm1606, %v1589, %v1040
        %v1623 = vsel %vm1606, %v1590, %v1042
        %v1624 = vsel %vm1606, %v1591, %v1044
        %v1625 = vsel %vm1606, %v1592, %v1046
        %v1626 = vsel %vm1606, %v1593, %v1048
        %v1627 = vsel %vm1606, %v1594, %v1050
        %v1628 = vsel %vm1606, %v1595, %v1052
        %v1629 = vsel %vm1606, %v1596, %v1054
        %v1630 = vsel %vm1606, %v1597, %v1056
        %v1631 = vsel %vm1606, %v1598, %v1058
        %v1632 = vsel %vm1606, %v1599, %v1060
        %v1633 = vsel %vm1606, %v1600, %v1062
        %v1634 = vsel %vm1606, %v1601, %v1064
        %v1635 = vsel %vm1606, %v1602, %v1066
        %v1636 = vsel %vm1606, %v1603, %v1068
        %v1637 = vsel %vm1606, %v1604, %v1070
        %v1638 = vsel %vm1606, %v1605, %v1072
        %vm1639 = vcmask 162816
        %v1640 = vsel %vm1639, %v1607, %v1111
        %v1641 = vsel %vm1639, %v1608, %v1113
        %v1642 = vsel %vm1639, %v1609, %v1115
        %v1643 = vsel %vm1639, %v1610, %v1117
        %v1644 = vsel %vm1639, %v1611, %v1119
        %v1645 = vsel %vm1639, %v1612, %v1121
        %v1646 = vsel %vm1639, %v1613, %v1123
        %v1647 = vsel %vm1639, %v1614, %v1125
        %v1648 = vsel %vm1639, %v1615, %v1127
        %v1649 = vsel %vm1639, %v1616, %v1129
        %v1650 = vsel %vm1639, %v1617, %v1131
        %v1651 = vsel %vm1639, %v1618, %v1133
        %v1652 = vsel %vm1639, %v1619, %v1135
        %v1653 = vsel %vm1639, %v1620, %v1137
        %v1654 = vsel %vm1639, %v1621, %v1139
        %v1655 = vsel %vm1639, %v1622, %v1141
        %v1656 = vsel %vm1639, %v1623, %v1143
        %v1657 = vsel %vm1639, %v1624, %v1145
        %v1658 = vsel %vm1639, %v1625, %v1147
        %v1659 = vsel %vm1639, %v1626, %v1149
        %v1660 = vsel %vm1639, %v1627, %v1151
        %v1661 = vsel %vm1639, %v1628, %v1153
        %v1662 = vsel %vm1639, %v1629, %v1155
        %v1663 = vsel %vm1639, %v1630, %v1157
        %v1664 = vsel %vm1639, %v1631, %v1159
        %v1665 = vsel %vm1639, %v1632, %v1161
        %v1666 = vsel %vm1639, %v1633, %v1163
        %v1667 = vsel %vm1639, %v1634, %v1165
        %v1668 = vsel %vm1639, %v1635, %v1167
        %v1669 = vsel %vm1639, %v1636, %v1169
        %v1670 = vsel %vm1639, %v1637, %v1171
        %v1671 = vsel %vm1639, %v1638, %v1173
        %vm1672 = vcmask 195584
        %v1673 = vsel %vm1672, %v1640, %v1209
        %v1674 = vsel %vm1672, %v1641, %v1211
        %v1675 = vsel %vm1672, %v1642, %v1213
        %v1676 = vsel %vm1672, %v1643, %v1215
        %v1677 = vsel %vm1672, %v1644, %v1217
        %v1678 = vsel %vm1672, %v1645, %v1219
        %v1679 = vsel %vm1672, %v1646, %v1221
        %v1680 = vsel %vm1672, %v1647, %v1223
        %v1681 = vsel %vm1672, %v1648, %v1225
        %v1682 = vsel %vm1672, %v1649, %v1227
        %v1683 = vsel %vm1672, %v1650, %v1229
        %v1684 = vsel %vm1672, %v1651, %v1231
        %v1685 = vsel %vm1672, %v1652, %v1233
        %v1686 = vsel %vm1672, %v1653, %v1235
        %v1687 = vsel %vm1672, %v1654, %v1237
        %v1688 = vsel %vm1672, %v1655, %v1239
        %v1689 = vsel %vm1672, %v1656, %v1241
        %v1690 = vsel %vm1672, %v1657, %v1243
        %v1691 = vsel %vm1672, %v1658, %v1245
        %v1692 = vsel %vm1672, %v1659, %v1247
        %v1693 = vsel %vm1672, %v1660, %v1249
        %v1694 = vsel %vm1672, %v1661, %v1251
        %v1695 = vsel %vm1672, %v1662, %v1253
        %v1696 = vsel %vm1672, %v1663, %v1255
        %v1697 = vsel %vm1672, %v1664, %v1257
        %v1698 = vsel %vm1672, %v1665, %v1259
        %v1699 = vsel %vm1672, %v1666, %v1261
        %v1700 = vsel %vm1672, %v1667, %v1263
        %v1701 = vsel %vm1672, %v1668, %v1265
        %v1702 = vsel %vm1672, %v1669, %v1267
        %v1703 = vsel %vm1672, %v1670, %v1269
        %v1704 = vsel %vm1672, %v1671, %v1271
        %vm1705 = vcmask 228352
        %v1706 = vsel %vm1705, %v1673, %v1311
        %v1707 = vsel %vm1705, %v1674, %v1313
        %v1708 = vsel %vm1705, %v1675, %v1315
        %v1709 = vsel %vm1705, %v1676, %v1317
        %v1710 = vsel %vm1705, %v1677, %v1319
        %v1711 = vsel %vm1705, %v1678, %v1321
        %v1712 = vsel %vm1705, %v1679, %v1323
        %v1713 = vsel %vm1705, %v1680, %v1325
        %v1714 = vsel %vm1705, %v1681, %v1327
        %v1715 = vsel %vm1705, %v1682, %v1329
        %v1716 = vsel %vm1705, %v1683, %v1331
        %v1717 = vsel %vm1705, %v1684, %v1333
        %v1718 = vsel %vm1705, %v1685, %v1335
        %v1719 = vsel %vm1705, %v1686, %v1337
        %v1720 = vsel %vm1705, %v1687, %v1339
        %v1721 = vsel %vm1705, %v1688, %v1341
        %v1722 = vsel %vm1705, %v1689, %v1343
        %v1723 = vsel %vm1705, %v1690, %v1345
        %v1724 = vsel %vm1705, %v1691, %v1347
        %v1725 = vsel %vm1705, %v1692, %v1349
        %v1726 = vsel %vm1705, %v1693, %v1351
        %v1727 = vsel %vm1705, %v1694, %v1353
        %v1728 = vsel %vm1705, %v1695, %v1355
        %v1729 = vsel %vm1705, %v1696, %v1357
        %v1730 = vsel %vm1705, %v1697, %v1359
        %v1731 = vsel %vm1705, %v1698, %v1361
        %v1732 = vsel %vm1705, %v1699, %v1363
        %v1733 = vsel %vm1705, %v1700, %v1365
        %v1734 = vsel %vm1705, %v1701, %v1367
        %v1735 = vsel %vm1705, %v1702, %v1369
        %v1736 = vsel %vm1705, %v1703, %v1371
        %v1737 = vsel %vm1705, %v1704, %v1373
        %vm1738 = vcmask 261120
        %v1739 = vsel %vm1738, %v1706, %v1412
        %v1740 = vsel %vm1738, %v1707, %v1414
        %v1741 = vsel %vm1738, %v1708, %v1416
        %v1742 = vsel %vm1738, %v1709, %v1418
        %v1743 = vsel %vm1738, %v1710, %v1420
        %v1744 = vsel %vm1738, %v1711, %v1422
        %v1745 = vsel %vm1738, %v1712, %v1424
        %v1746 = vsel %vm1738, %v1713, %v1426
        %v1747 = vsel %vm1738, %v1714, %v1428
        %v1748 = vsel %vm1738, %v1715, %v1430
        %v1749 = vsel %vm1738, %v1716, %v1432
        %v1750 = vsel %vm1738, %v1717, %v1434
        %v1751 = vsel %vm1738, %v1718, %v1436
        %v1752 = vsel %vm1738, %v1719, %v1438
        %v1753 = vsel %vm1738, %v1720, %v1440
        %v1754 = vsel %vm1738, %v1721, %v1442
        %v1755 = vsel %vm1738, %v1722, %v1444
        %v1756 = vsel %vm1738, %v1723, %v1446
        %v1757 = vsel %vm1738, %v1724, %v1448
        %v1758 = vsel %vm1738, %v1725, %v1450
        %v1759 = vsel %vm1738, %v1726, %v1452
        %v1760 = vsel %vm1738, %v1727, %v1454
        %v1761 = vsel %vm1738, %v1728, %v1456
        %v1762 = vsel %vm1738, %v1729, %v1458
        %v1763 = vsel %vm1738, %v1730, %v1460
        %v1764 = vsel %vm1738, %v1731, %v1462
        %v1765 = vsel %vm1738, %v1732, %v1464
        %v1766 = vsel %vm1738, %v1733, %v1466
        %v1767 = vsel %vm1738, %v1734, %v1468
        %v1768 = vsel %vm1738, %v1735, %v1470
        %v1769 = vsel %vm1738, %v1736, %v1472
        %v1770 = vsel %vm1738, %v1737, %v1474
        %v1771 = vpack.c.bf16 %v1740, %v1739
        %v1772 = vpack.c.bf16 %v1742, %v1741
        %v1773 = vpack.c.bf16 %v1744, %v1743
        %v1774 = vpack.c.bf16 %v1746, %v1745
        %v1775 = vpack.c.bf16 %v1748, %v1747
        %v1776 = vpack.c.bf16 %v1750, %v1749
        %v1777 = vpack.c.bf16 %v1752, %v1751
        %v1778 = vpack.c.bf16 %v1754, %v1753
        %v1779 = vpack.c.bf16 %v1756, %v1755
        %v1780 = vpack.c.bf16 %v1758, %v1757
        %v1781 = vpack.c.bf16 %v1760, %v1759
        %v1782 = vpack.c.bf16 %v1762, %v1761
        %v1783 = vpack.c.bf16 %v1764, %v1763
        %v1784 = vpack.c.bf16 %v1766, %v1765
        %v1785 = vpack.c.bf16 %v1768, %v1767
        %v1786 = vpack.c.bf16 %v1770, %v1769
        %v1787 = vld [vmem:[%s3] sm:$0xf]
        %v1788 = vld [vmem:[%s3 + $0x4] sm:$0xf]
        %v1789 = vld [vmem:[%s3 + $0x8] sm:$0xf]
        %v1790 = vld [vmem:[%s3 + $0xc] sm:$0xf]
        %v1791 = vld [vmem:[%s3 + $0x10] sm:$0x3]
        %v1797 = vunpack.c.l.b16 %v1787
        %v1798 = vunpack.c.l.b16 %v1788
        %v1799 = vunpack.c.l.b16 %v1789
        %v1800 = vunpack.c.l.b16 %v1790
        %v1801 = vunpack.c.l.b16 %v1791
        %v1802 = vpack.c.b16 %v1798, %v1797
        %v1803 = vpack.c.b16 %v1800, %v1799
        %v1804 = vpack.c.b16 %v1801, %v1801
        %vm1807 = vcmask 293888
        %v1809 = vsel %vm1807, %v1771, 0
        %v1812 = vsel %vm1807, %v1772, 0
        %v1815 = vsel %vm1807, %v1773, 0
        %v1818 = vsel %vm1807, %v1774, 0
        %v1821 = vsel %vm1807, %v1775, 0
        %v1824 = vsel %vm1807, %v1776, 0
        %v1827 = vsel %vm1807, %v1777, 0
        %v1830 = vsel %vm1807, %v1778, 0
        %v1833 = vsel %vm1807, %v1779, 0
        %v1836 = vsel %vm1807, %v1780, 0
        %v1839 = vsel %vm1807, %v1781, 0
        %v1842 = vsel %vm1807, %v1782, 0
        %v1845 = vsel %vm1807, %v1783, 0
        %v1848 = vsel %vm1807, %v1784, 0
        %v1851 = vsel %vm1807, %v1785, 0
        %v1854 = vsel %vm1807, %v1786, 0
        %vm1856 = vcmask 1041408
        %v1858 = vsel %vm1856, %v1804, 0
        %1860 = vmatprep.subr.bf16.mxu0 0
        %1861 = vmatpush1.bf16.msra.mxu0 0
        %1862 = vmatprep.subr.bf16.mxu0 0
        %1863 = vmatpush1.bf16.msra.mxu0 0
        %1864 = vmatprep.subr.bf16.mxu0 0
        %1865 = vmatpush1.bf16.msra.mxu0 0
        %1866 = vmatprep.subr.bf16.mxu0 0
        %1867 = vmatpush1.bf16.msra.mxu0 0
        %1868 = vmatprep.subr.bf16.mxu0 0
        %1869 = vmatpush1.bf16.msra.mxu0 0
        %1870 = vmatprep.subr.bf16.mxu0 0
        %1871 = vmatpush1.bf16.msra.mxu0 %v1858
        %1872 = vmatprep.subr.bf16.mxu0 0
        %1873 = vmatpush1.bf16.msra.mxu0 %v1803
        %1874 = vmatprep.subr.bf16.mxu0 0
        %1875 = vmatpush1.bf16.msra.mxu0 %v1802
        %1876 = vmatprep.subr.bf16.mxu0 0
        %1877 = vmatpush2.bf16.msra.mxu0 0
        %1878 = vmatprep.subr.bf16.mxu0 0
        %1879 = vmatpush2.bf16.msra.mxu0 0
        %1880 = vmatprep.subr.bf16.mxu0 0
        %1881 = vmatpush2.bf16.msra.mxu0 0
        %1882 = vmatprep.subr.bf16.mxu0 0
        %1883 = vmatpush2.bf16.msra.mxu0 0
        %1884 = vmatprep.subr.bf16.mxu0 0
        %1885 = vmatpush2.bf16.msra.mxu0 0
        %1886 = vmatprep.subr.bf16.mxu0 0
        %1887 = vmatpush2.bf16.msra.mxu0 0
        %1888 = vmatprep.subr.bf16.mxu0 0
        %1889 = vmatpush2.bf16.msra.mxu0 0
        %1890 = vmatprep.subr.bf16.mxu0 0
        %1891 = vmatpush2.bf16.msra.mxu0 0
        %1892 = vmatprep.mubr.bf16.mxu0 0
        %1893 = vmatmul.mubr.bf16.gmra.mxu0 %v1809
        %v1894 = vpop.f32.mrf.mxu0
        %v1895 = vadd.f32 0.0, %v1894
        %v1896 = vpop.f32.mrf.mxu0
        %v1897 = vpop.f32.mrf.mxu0
        %v1898 = vadd.f32 0.0, %v1897
        %v1899 = vpop.f32.mrf.mxu0
        %1900 = vmatprep.mubr.bf16.mxu0 0
        %1901 = vmatmul.mubr.bf16.gmra.mxu0 %v1812
        %v1902 = vpop.f32.mrf.mxu0
        %v1903 = vadd.f32 0.0, %v1902
        %v1904 = vpop.f32.mrf.mxu0
        %v1905 = vpop.f32.mrf.mxu0
        %v1906 = vadd.f32 0.0, %v1905
        %v1907 = vpop.f32.mrf.mxu0
        %1908 = vmatprep.mubr.bf16.mxu0 0
        %1909 = vmatmul.mubr.bf16.gmra.mxu0 %v1815
        %v1910 = vpop.f32.mrf.mxu0
        %v1911 = vadd.f32 0.0, %v1910
        %v1912 = vpop.f32.mrf.mxu0
        %v1913 = vpop.f32.mrf.mxu0
        %v1914 = vadd.f32 0.0, %v1913
        %v1915 = vpop.f32.mrf.mxu0
        %1916 = vmatprep.mubr.bf16.mxu0 0
        %1917 = vmatmul.mubr.bf16.gmra.mxu0 %v1818
        %v1918 = vpop.f32.mrf.mxu0
        %v1919 = vadd.f32 0.0, %v1918
        %v1920 = vpop.f32.mrf.mxu0
        %v1921 = vpop.f32.mrf.mxu0
        %v1922 = vadd.f32 0.0, %v1921
        %v1923 = vpop.f32.mrf.mxu0
        %1924 = vmatprep.mubr.bf16.mxu0 0
        %1925 = vmatmul.mubr.bf16.gmra.mxu0 %v1821
        %v1926 = vpop.f32.mrf.mxu0
        %v1927 = vadd.f32 0.0, %v1926
        %v1928 = vpop.f32.mrf.mxu0
        %v1929 = vpop.f32.mrf.mxu0
        %v1930 = vadd.f32 0.0, %v1929
        %v1931 = vpop.f32.mrf.mxu0
        %1932 = vmatprep.mubr.bf16.mxu0 0
        %1933 = vmatmul.mubr.bf16.gmra.mxu0 %v1824
        %v1934 = vpop.f32.mrf.mxu0
        %v1935 = vadd.f32 0.0, %v1934
        %v1936 = vpop.f32.mrf.mxu0
        %v1937 = vpop.f32.mrf.mxu0
        %v1938 = vadd.f32 0.0, %v1937
        %v1939 = vpop.f32.mrf.mxu0
        %1940 = vmatprep.mubr.bf16.mxu0 0
        %1941 = vmatmul.mubr.bf16.gmra.mxu0 %v1827
        %v1942 = vpop.f32.mrf.mxu0
        %v1943 = vadd.f32 0.0, %v1942
        %v1944 = vpop.f32.mrf.mxu0
        %v1945 = vpop.f32.mrf.mxu0
        %v1946 = vadd.f32 0.0, %v1945
        %v1947 = vpop.f32.mrf.mxu0
        %1948 = vmatprep.mubr.bf16.mxu0 0
        %1949 = vmatmul.mubr.bf16.gmra.mxu0 %v1830
        %v1950 = vpop.f32.mrf.mxu0
        %v1951 = vadd.f32 0.0, %v1950
        %v1952 = vpop.f32.mrf.mxu0
        %v1953 = vpop.f32.mrf.mxu0
        %v1954 = vadd.f32 0.0, %v1953
        %v1955 = vpop.f32.mrf.mxu0
        %1956 = vmatprep.mubr.bf16.mxu0 0
        %1957 = vmatmul.mubr.bf16.gmra.mxu0 %v1833
        %v1958 = vpop.f32.mrf.mxu0
        %v1959 = vadd.f32 0.0, %v1958
        %v1960 = vpop.f32.mrf.mxu0
        %v1961 = vpop.f32.mrf.mxu0
        %v1962 = vadd.f32 0.0, %v1961
        %v1963 = vpop.f32.mrf.mxu0
        %1964 = vmatprep.mubr.bf16.mxu0 0
        %1965 = vmatmul.mubr.bf16.gmra.mxu0 %v1836
        %v1966 = vpop.f32.mrf.mxu0
        %v1967 = vadd.f32 0.0, %v1966
        %v1968 = vpop.f32.mrf.mxu0
        %v1969 = vpop.f32.mrf.mxu0
        %v1970 = vadd.f32 0.0, %v1969
        %v1971 = vpop.f32.mrf.mxu0
        %1972 = vmatprep.mubr.bf16.mxu0 0
        %1973 = vmatmul.mubr.bf16.gmra.mxu0 %v1839
        %v1974 = vpop.f32.mrf.mxu0
        %v1975 = vadd.f32 0.0, %v1974
        %v1976 = vpop.f32.mrf.mxu0
        %v1977 = vpop.f32.mrf.mxu0
        %v1978 = vadd.f32 0.0, %v1977
        %v1979 = vpop.f32.mrf.mxu0
        %1980 = vmatprep.mubr.bf16.mxu0 0
        %1981 = vmatmul.mubr.bf16.gmra.mxu0 %v1842
        %v1982 = vpop.f32.mrf.mxu0
        %v1983 = vadd.f32 0.0, %v1982
        %v1984 = vpop.f32.mrf.mxu0
        %v1985 = vpop.f32.mrf.mxu0
        %v1986 = vadd.f32 0.0, %v1985
        %v1987 = vpop.f32.mrf.mxu0
        %1988 = vmatprep.mubr.bf16.mxu0 0
        %1989 = vmatmul.mubr.bf16.gmra.mxu0 %v1845
        %v1990 = vpop.f32.mrf.mxu0
        %v1991 = vadd.f32 0.0, %v1990
        %v1992 = vpop.f32.mrf.mxu0
        %v1993 = vpop.f32.mrf.mxu0
        %v1994 = vadd.f32 0.0, %v1993
        %v1995 = vpop.f32.mrf.mxu0
        %1996 = vmatprep.mubr.bf16.mxu0 0
        %1997 = vmatmul.mubr.bf16.gmra.mxu0 %v1848
        %v1998 = vpop.f32.mrf.mxu0
        %v1999 = vadd.f32 0.0, %v1998
        %v2000 = vpop.f32.mrf.mxu0
        %v2001 = vpop.f32.mrf.mxu0
        %v2002 = vadd.f32 0.0, %v2001
        %v2003 = vpop.f32.mrf.mxu0
        %2004 = vmatprep.mubr.bf16.mxu0 0
        %2005 = vmatmul.mubr.bf16.gmra.mxu0 %v1851
        %v2006 = vpop.f32.mrf.mxu0
        %v2007 = vadd.f32 0.0, %v2006
        %v2008 = vpop.f32.mrf.mxu0
        %v2009 = vpop.f32.mrf.mxu0
        %v2010 = vadd.f32 0.0, %v2009
        %v2011 = vpop.f32.mrf.mxu0
        %2012 = vmatprep.mubr.bf16.mxu0 0
        %2013 = vmatmul.mubr.bf16.gmra.mxu0 %v1854
        %v2014 = vpop.f32.mrf.mxu0
        %v2015 = vadd.f32 0.0, %v2014
        %v2016 = vpop.f32.mrf.mxu0
        %v2017 = vpop.f32.mrf.mxu0
        %v2018 = vadd.f32 0.0, %v2017
        %v2019 = vpop.f32.mrf.mxu0
        %2020 = vdwg.mxu0
        %2021 = vst [vmem:[%s190] sm:$0xff] %v1895
        %2022 = vst [vmem:[%s190 + $0x8] sm:$0xff] %v1898
        %2023 = vst [vmem:[%s190 + $0x10] sm:$0xff] %v1903
        %2024 = vst [vmem:[%s190 + $0x18] sm:$0xff] %v1906
        %2025 = vst [vmem:[%s190 + $0x20] sm:$0xff] %v1911
        %2026 = vst [vmem:[%s190 + $0x28] sm:$0xff] %v1914
        %2027 = vst [vmem:[%s190 + $0x30] sm:$0xff] %v1919
        %2028 = vst [vmem:[%s190 + $0x38] sm:$0xff] %v1922
        %2029 = vst [vmem:[%s190 + $0x40] sm:$0xff] %v1927
        %2030 = vst [vmem:[%s190 + $0x48] sm:$0xff] %v1930
        %2031 = vst [vmem:[%s190 + $0x50] sm:$0xff] %v1935
        %2032 = vst [vmem:[%s190 + $0x58] sm:$0xff] %v1938
        %2033 = vst [vmem:[%s190 + $0x60] sm:$0xff] %v1943
        %2034 = vst [vmem:[%s190 + $0x68] sm:$0xff] %v1946
        %2035 = vst [vmem:[%s190 + $0x70] sm:$0xff] %v1951
        %2036 = vst [vmem:[%s190 + $0x78] sm:$0xff] %v1954
        %2037 = vst [vmem:[%s190 + $0x80] sm:$0xff] %v1959
        %2038 = vst [vmem:[%s190 + $0x88] sm:$0xff] %v1962
        %2039 = vst [vmem:[%s190 + $0x90] sm:$0xff] %v1967
        %2040 = vst [vmem:[%s190 + $0x98] sm:$0xff] %v1970
        %2041 = vst [vmem:[%s190 + $0xa0] sm:$0xff] %v1975
        %2042 = vst [vmem:[%s190 + $0xa8] sm:$0xff] %v1978
        %2043 = vst [vmem:[%s190 + $0xb0] sm:$0xff] %v1983
        %2044 = vst [vmem:[%s190 + $0xb8] sm:$0xff] %v1986
        %2045 = vst [vmem:[%s190 + $0xc0] sm:$0xff] %v1991
        %2046 = vst [vmem:[%s190 + $0xc8] sm:$0xff] %v1994
        %2047 = vst [vmem:[%s190 + $0xd0] sm:$0xff] %v1999
        %2048 = vst [vmem:[%s190 + $0xd8] sm:$0xff] %v2002
        %2049 = vst [vmem:[%s190 + $0xe0] sm:$0xff] %v2007
        %2050 = vst [vmem:[%s190 + $0xe8] sm:$0xff] %v2010
        %2051 = vst [vmem:[%s190 + $0xf0] sm:$0xff] %v2015
        %2052 = vst [vmem:[%s190 + $0xf8] sm:$0xff] %v2018
        %s2053 = sand.u32 %s115, 1
        %s2054 = scalar_lea.sflag [#allocation3], %s2053
        %s2055 = sand.u32 %s115, 1
        %s2056 = smul.addr %s2055, 256
        %s2057 = scalar_lea.vmem [#allocation2], %s2056
        // Predicated region
        $region37: #{tpu_custom_call.1} parent=35 // pred_check
          %p2058 = pneg %p125
        $region38: #{tpu_custom_call.1} parent=35 // pred_check_branch
          %2060 = sbr.rel (%p2058) target = $region40
        $region39: #{tpu_custom_call.1} parent=35 // pred_region
          %s2062 = ssub.s32 4096, 4096
          %2063 = vsyncadd %s2054, %s2062
          %s2064 = smul.addr %s18, 32
          %s2065 = smul.addr %s2064, 128
          %s2066 = scalar_lea.hbm %s4, %s2065
          %s2067 = sshll.u32 %s2057, 4
          %s2068 = int_to_ptr.vmem [resolvable:$true] %s2067
          %2073 = dma.vmem_to_hbm [thread:$0]  %s2068, 4096, %s2066, %s2054, 128, 128, 8
        $region40: #{tpu_custom_call.1} parent=35 // pred_fallthru
          _
      $region36: #{tpu_custom_call.1} parent=5 // pred_fallthru
        _
      %p2074 = scmp.le.s32.totalorder 2, %s13
      // Predicated region
      $region41: #{tpu_custom_call.1} parent=5 // pred_check
        %p2075 = pneg %p2074
      $region42: #{tpu_custom_call.1} parent=5 // pred_check_branch
        %2077 = sbr.rel (%p2075) target = $region44
      $region43: #{tpu_custom_call.1} parent=5 // pred_region
        %s2078 = ssub.s32 %s13, 2
        // Predicated region
        $region45: #{tpu_custom_call.1} parent=43 // pred_check
          %p2079 = pneg %p131
        $region46: #{tpu_custom_call.1} parent=43 // pred_check_branch
          %2081 = sbr.rel (%p2079) target = $region48
        $region47: #{tpu_custom_call.1} parent=43 // pred_region
          %s2082 = sand.u32 %s116, 1
          %s2083 = scalar_lea.sflag [#allocation3], %s2082
          %s2084 = sand.u32 %s116, 1
          %s2085 = smul.addr %s2084, 256
          %s2086 = scalar_lea.vmem [#allocation2], %s2085
          %2087 = dma.done %s2083, 4096
        $region48: #{tpu_custom_call.1} parent=43 // pred_fallthru
          _
      $region44: #{tpu_custom_call.1} parent=5 // pred_fallthru
        _
    $region6: #{tpu_custom_call.1} parent=1 // loop_footer
      %s17 = sadd.s32 1, %s13
    $region7: #{tpu_custom_call.1} parent=1 // loop_footer_branch
      %12 = sbr.rel target = $region3
    $region8: #{tpu_custom_call.1} parent=1 // loop_exit
      _
    %2088 = vsyncpa [#allocation3], 1
    %s2089 = scalar_lea.sflag [#allocation3], 1
    %2090 = vsyncpa %s2089, 1

</llo_original>
